<compile_context>
chip_gen: v7x
topology: tpu7x:2x2x1
jax: 0.10.0
libtpu: 0.0.40
codegen_flags: <defaults>
</compile_context>

<pallas_src>
import functools

import jax
import jax.numpy as jnp
from jax.experimental import pallas as pl
from jax.experimental.pallas import tpu as pltpu

LANE = 128

VMEM_SPEC = pl.BlockSpec(memory_space=pltpu.MemorySpace.VMEM)


def _round_up(x, m):
    return (x + m - 1) // m * m


def _pad_axis(x, axis, target):
    pads = [(0, 0)] * x.ndim
    pads[axis] = (0, target - x.shape[axis])
    return jnp.pad(x, pads)


# -----------------------------------------------------------------------------
# Fused kernel: embedding gather (one-hot MXU) + GRU last hidden + UpDn
# attention + attended pooling + q_net / v_net + joint product.
# -----------------------------------------------------------------------------
def ud_fused_kernel(q_ids_ref,   # [T*B, 1] int32  token ids, t-major
                    gx_tab_ref,  # [VOCAB, 3*HP]   emb @ W_ih (gate-padded) + fused biases
                    whh_ref,     # [HP, 3*HP]      recurrent weights (gate/row zero-padded)
                    bhn_ref,     # [1, HP]         b_hh of the n gate (needed inside r*(.))
                    v_ref,       # [B, N, VD]      image features
                    wav_ref,     # [VD, HP]        attention FCNet, v part
                    waq_ref,     # [HP, HP]        attention FCNet, q part
                    ba_ref,      # [1, HP]
                    wl_ref,      # [1, HP]         Linear(num_hid, 1) weight as a row
                    wq_ref,      # [HP, HP]        q_net
                    bq_ref,      # [1, HP]
                    wv_ref,      # [VD, HP]        v_net
                    bv_ref,      # [1, HP]
                    out_ref,     # [B, HP]         joint_repr (valid lanes [:E])
                    *, seq_len):
    HP = whh_ref.shape[0]
    TB = q_ids_ref.shape[0]
    B = TB // seq_len
    vocab = gx_tab_ref.shape[0]
    _, N, VD = v_ref.shape

    # ---- WordEmbedding gather + input-to-hidden GRU matmul (fused & hoisted) --
    # gx_tab already holds emb_table @ W_ih (+ fused gate biases); the one-hot
    # matmul performs the row gather for every (t, b) token in one MXU push and
    # is exact (each one-hot row selects a single table row).
    ids = q_ids_ref[...]                                              # [T*B, 1]
    iota = jax.lax.broadcasted_iota(jnp.int32, (TB, vocab), 1)
    onehot = (ids == iota).astype(jnp.float32)
    gx_all = jnp.dot(onehot, gx_tab_ref[...],
                     preferred_element_type=jnp.float32)              # [T*B, 3*HP]

    # ---- GRU recurrence (PyTorch gate order r, z, n), keep last hidden -------
    # Static unroll: seq_len is small and the only live carry is h ([B, HP]).
    whh = whh_ref[...]
    bhn = bhn_ref[...]
    h = jnp.zeros((B, HP), jnp.float32)
    for t in range(seq_len):
        gx = gx_all[t * B:(t + 1) * B, :]                             # [B, 3*HP]
        gh = jnp.dot(h, whh, preferred_element_type=jnp.float32)      # [B, 3*HP]
        r = jax.nn.sigmoid(gx[:, 0:HP] + gh[:, 0:HP])
        z = jax.nn.sigmoid(gx[:, HP:2 * HP] + gh[:, HP:2 * HP])
        n = jnp.tanh(gx[:, 2 * HP:3 * HP] + r * (gh[:, 2 * HP:3 * HP] + bhn))
        h = (1.0 - z) * n + z * h        # q_emb stays in VMEM (no HBM round-trip)

    # ---- UpDn attention: FCNet(cat(v, q)) split as v-part + q-part -----------
    v = v_ref[...]
    v2 = v.reshape(B * N, VD)
    v_part = jnp.dot(v2, wav_ref[...], preferred_element_type=jnp.float32)
    q_part = jnp.dot(h, waq_ref[...], preferred_element_type=jnp.float32)
    joint = jax.nn.relu(v_part.reshape(B, N, HP) + q_part[:, None, :]
                        + ba_ref[...][None, :, :])                    # [B, N, HP]

    # Linear(num_hid, 1): VPU broadcast-multiply + lane reduction (no 1-col MXU).
    # The Linear bias is dropped: softmax is shift-invariant, so it cancels.
    logits = jnp.sum(joint * wl_ref[...][None, :, :], axis=-1)        # [B, N]

    # Softmax over objects; divide via EUP approx reciprocal + one Newton step.
    m = jnp.max(logits, axis=-1, keepdims=True)
    e = jnp.exp(logits - m)
    s = jnp.sum(e, axis=-1, keepdims=True)
    inv = pl.reciprocal(s, approx=True)
    inv = inv * (2.0 - s * inv)          # Newton refinement -> full f32 precision
    att = e * inv                         # [B, N]

    # v_emb = (att * v).sum(1) as a batched MXU contraction.
    v_emb = jnp.einsum("bqn,bnv->bqv", att[:, None, :], v,
                       preferred_element_type=jnp.float32)[:, 0, :]   # [B, VD]

    # ---- q_net / v_net FCNets (Linear + ReLU) and joint product --------------
    q_repr = jax.nn.relu(jnp.dot(h, wq_ref[...],
                                 preferred_element_type=jnp.float32) + bq_ref[...])
    v_repr = jax.nn.relu(jnp.dot(v_emb, wv_ref[...],
                                 preferred_element_type=jnp.float32) + bv_ref[...])
    out_ref[...] = q_repr * v_repr                                    # [B, HP]


# -----------------------------------------------------------------------------
# One-time parameter preparation (host side): lane padding + algebraic fusions.
# weight_norm in FCNet is a pure reparametrization; effective weights are used.
# Dropout probabilities are 0.0 in this configuration (no-op at inference).
# -----------------------------------------------------------------------------
def prepare_params(p):
    E = p["w_q"].shape[1]            # embedding_size == q_emb.num_hid
    H = p["w_hh_t"].shape[0]         # GRU hidden size (== E here)
    HP = _round_up(max(E, H), LANE)

    def pad_gate_cols(w):            # [*, 3H] -> [*, 3*HP], per-gate zero padding
        return jnp.concatenate(
            [_pad_axis(w[:, g * H:(g + 1) * H], 1, HP) for g in range(3)], axis=1)

    def pad_row(bvec):               # [E] -> [1, HP]
        return _pad_axis(bvec.reshape(1, -1), 1, HP).astype(jnp.float32)

    w_ih_pad = pad_gate_cols(p["w_ih_t"])                               # [300, 3*HP]
    w_hh_pad = _pad_axis(pad_gate_cols(p["w_hh_t"]), 0, HP)             # [HP, 3*HP]

    b_ih, b_hh = p["b_ih"], p["b_hh"]
    # Fold b_hh into b_ih for the r and z gates (mathematically identical); the
    # n gate keeps b_hh separate because it sits inside r * (h @ W_hh_n + b_hh_n).
    bias_fused = jnp.concatenate([
        _pad_axis((b_ih[0:H] + b_hh[0:H]).reshape(1, -1), 1, HP),           # r
        _pad_axis((b_ih[H:2 * H] + b_hh[H:2 * H]).reshape(1, -1), 1, HP),   # z
        _pad_axis(b_ih[2 * H:3 * H].reshape(1, -1), 1, HP),                 # n
    ], axis=1)                                                          # [1, 3*HP]

    # gather(emb, q) @ W_ih == (emb @ W_ih)[q]; fuse the bias in too (the one-hot
    # matmul selects exactly one row, so the result stays exact).
    gx_table = (p["emb_table"] @ w_ih_pad + bias_fused).astype(jnp.float32)

    # NOTE: p["b_lin"] (Linear(num_hid, 1) bias) is intentionally not prepared:
    # it is a constant shift of the attention logits and cancels under softmax.
    return {
        "E": E,
        "gx_table": gx_table,                                           # [VOCAB, 3*HP]
        "w_hh": w_hh_pad.astype(jnp.float32),                           # [HP, 3*HP]
        "b_hh_n": pad_row(b_hh[2 * H:3 * H]),                           # [1, HP]
        "w_att_v": _pad_axis(p["w_att_v"], 1, HP).astype(jnp.float32),  # [VD, HP]
        "w_att_q": _pad_axis(_pad_axis(p["w_att_q"], 0, HP), 1, HP).astype(jnp.float32),
        "b_att": pad_row(p["b_att"]),
        "w_lin_row": pad_row(p["w_lin"][:, 0]),
        "w_q": _pad_axis(_pad_axis(p["w_q"], 0, HP), 1, HP).astype(jnp.float32),
        "b_q": pad_row(p["b_q"]),
        "w_v": _pad_axis(p["w_v"], 1, HP).astype(jnp.float32),          # [VD, HP]
        "b_v": pad_row(p["b_v"]),
    }


# -----------------------------------------------------------------------------
# UD.forward
# -----------------------------------------------------------------------------
def ud_forward(v, b, q, qlen, prep):
    del b, qlen  # b is unused by UD.forward; qlen is not used by q_emb(w_emb)
    B, T = q.shape
    HP = prep["w_hh"].shape[0]
    # t-major ids so the hoisted gx rows for time step t are a contiguous slab.
    q_ids = q.T.reshape(T * B, 1).astype(jnp.int32)

    out_pad = pl.pallas_call(
        functools.partial(ud_fused_kernel, seq_len=T),
        out_shape=jax.ShapeDtypeStruct((B, HP), jnp.float32),
        in_specs=[VMEM_SPEC] * 13,
        out_specs=VMEM_SPEC,
    )(q_ids, prep["gx_table"], prep["w_hh"], prep["b_hh_n"], v,
      prep["w_att_v"], prep["w_att_q"], prep["b_att"], prep["w_lin_row"],
      prep["w_q"], prep["b_q"], prep["w_v"], prep["b_v"])
    # Slice the valid lanes outside the kernel (output store stays 128-lane dense).
    return out_pad[:, :prep["E"]]


# -----------------------------------------------------------------------------
# Pure-JAX reference (unpadded, matches the PyTorch module) for verification.
# -----------------------------------------------------------------------------
def ud_reference(v, q, params):
    w_emb = jnp.take(params["emb_table"], q, axis=0)
    B, T, _ = w_emb.shape
    H = params["w_hh_t"].shape[0]
    h = jnp.zeros((B, H), jnp.float32)
    for t in range(T):
        gx = w_emb[:, t, :] @ params["w_ih_t"] + params["b_ih"]
        gh = h @ params["w_hh_t"] + params["b_hh"]
        r = jax.nn.sigmoid(gx[:, 0:H] + gh[:, 0:H])
        z = jax.nn.sigmoid(gx[:, H:2 * H] + gh[:, H:2 * H])
        n = jnp.tanh(gx[:, 2 * H:] + r * gh[:, 2 * H:])
        h = (1.0 - z) * n + z * h
    q_emb = h
    joint = jax.nn.relu(jnp.einsum("bnv,ve->bne", v, params["w_att_v"])
                        + (q_emb @ params["w_att_q"])[:, None, :] + params["b_att"])
    logits = jnp.einsum("bne,eo->bno", joint, params["w_lin"])[..., 0] + params["b_lin"][0]
    att = jax.nn.softmax(logits, axis=-1)
    v_emb = jnp.sum(att[:, :, None] * v, axis=1)
    q_repr = jax.nn.relu(q_emb @ params["w_q"] + params["b_q"])
    v_repr = jax.nn.relu(v_emb @ params["w_v"] + params["b_v"])
    return q_repr * v_repr


if __name__ == "__main__":
    # Small, forward-consistent shapes.
    B, T, N = 2, 8, 8       # batch, seq_length, num_objs
    VOCAB, WDIM = 50, 300   # vocab size, word2vec dim (fixed 300 in module)
    E = 32                  # args.embedding_size == q_emb.num_hid == attention num_hid
    VD = 64                 # args.v_dim
    BD = 4                  # b_dim (unused)

    key = jax.random.PRNGKey(0)
    ks = jax.random.split(key, 20)
    s = 0.05

    q = jax.random.randint(ks[0], (B, T), 0, VOCAB, dtype=jnp.int32)
    v = jax.random.normal(ks[1], (B, N, VD), jnp.float32)
    b = jax.random.normal(ks[2], (B, N, BD), jnp.float32)
    qlen = jnp.full((B,), T, dtype=jnp.int32)

    params = {
        "emb_table": jax.random.normal(ks[3], (VOCAB, WDIM), jnp.float32) * s,
        # GRU (PyTorch layout transposed: [in, 3H] / [H, 3H], gate order r,z,n)
        "w_ih_t": jax.random.normal(ks[4], (WDIM, 3 * E), jnp.float32) * s,
        "w_hh_t": jax.random.normal(ks[5], (E, 3 * E), jnp.float32) * s,
        "b_ih": jax.random.normal(ks[6], (3 * E,), jnp.float32) * s,
        "b_hh": jax.random.normal(ks[7], (3 * E,), jnp.float32) * s,
        # UpDnAttention: FCNet([v_dim + q_dim, num_hid]) weight split into v / q parts
        "w_att_v": jax.random.normal(ks[8], (VD, E), jnp.float32) * s,
        "w_att_q": jax.random.normal(ks[9], (E, E), jnp.float32) * s,
        "b_att": jax.random.normal(ks[10], (E,), jnp.float32) * s,
        "w_lin": jax.random.normal(ks[11], (E, 1), jnp.float32) * s,
        "b_lin": jax.random.normal(ks[12], (1,), jnp.float32) * s,
        # q_net / v_net FCNets
        "w_q": jax.random.normal(ks[13], (E, E), jnp.float32) * s,
        "b_q": jax.random.normal(ks[14], (E,), jnp.float32) * s,
        "w_v": jax.random.normal(ks[15], (VD, E), jnp.float32) * s,
        "b_v": jax.random.normal(ks[16], (E,), jnp.float32) * s,
    }

    prep = prepare_params(params)

    out = ud_forward(v, b, q, qlen, prep)
    out = jax.block_until_ready(out)

    ref = ud_reference(v, q, params)
    assert out.shape == (B, E)
    assert jnp.allclose(out, ref, atol=1e-4, rtol=1e-4), "Pallas output mismatch vs reference"

    print("KERNEL_OK")
</pallas_src>

<mosaic_0001>
module attributes {stable_mosaic.version = 11 : i64} {
  func.func @ud_fused_kernel(%arg0: memref<16x1xi32, #tpu.memory_space<vmem>>, %arg1: memref<50x384xf32, #tpu.memory_space<vmem>>, %arg2: memref<128x384xf32, #tpu.memory_space<vmem>>, %arg3: memref<1x128xf32, #tpu.memory_space<vmem>>, %arg4: memref<2x8x64xf32, #tpu.memory_space<vmem>>, %arg5: memref<64x128xf32, #tpu.memory_space<vmem>>, %arg6: memref<128x128xf32, #tpu.memory_space<vmem>>, %arg7: memref<1x128xf32, #tpu.memory_space<vmem>>, %arg8: memref<1x128xf32, #tpu.memory_space<vmem>>, %arg9: memref<128x128xf32, #tpu.memory_space<vmem>>, %arg10: memref<1x128xf32, #tpu.memory_space<vmem>>, %arg11: memref<64x128xf32, #tpu.memory_space<vmem>>, %arg12: memref<1x128xf32, #tpu.memory_space<vmem>>, %arg13: memref<2x128xf32, #tpu.memory_space<vmem>>) attributes {dimension_semantics = [], scalar_prefetch = 0 : i64, scratch_operands = 0 : i64, tpu.core_type = #tpu.core_type<tc>} {
    %c0 = arith.constant 0 : index
    %c0_0 = arith.constant 0 : index
    %0 = vector.load %arg0[%c0, %c0_0] : memref<16x1xi32, #tpu.memory_space<vmem>>, vector<16x1xi32>
    %1 = tpu.iota {dimensions = array<i32: 1>} : vector<16x50xi32>
    %2 = vector.broadcast %0 : vector<16x1xi32> to vector<16x50xi32>
    %3 = arith.cmpi eq, %2, %1 : vector<16x50xi32>
    %4 = arith.extui %3 : vector<16x50xi1> to vector<16x50xi32>
    %5 = arith.sitofp %4 : vector<16x50xi32> to vector<16x50xf32>
    %c0_1 = arith.constant 0 : index
    %c0_2 = arith.constant 0 : index
    %6 = vector.load %arg1[%c0_1, %c0_2] : memref<50x384xf32, #tpu.memory_space<vmem>>, vector<50x384xf32>
    %cst = arith.constant dense<0.000000e+00> : vector<16x384xf32>
    %7 = tpu.matmul %5, %6, %cst {dimension_numbers = #tpu.dot_dimension_numbers<[1], [0], [0], [1], [0, 0, 1, 1], [], []>} : vector<16x50xf32>, vector<50x384xf32>, vector<16x384xf32> -> vector<16x384xf32>
    %c0_3 = arith.constant 0 : index
    %c0_4 = arith.constant 0 : index
    %8 = vector.load %arg2[%c0_3, %c0_4] : memref<128x384xf32, #tpu.memory_space<vmem>>, vector<128x384xf32>
    %c0_5 = arith.constant 0 : index
    %c0_6 = arith.constant 0 : index
    %9 = vector.load %arg3[%c0_5, %c0_6] : memref<1x128xf32, #tpu.memory_space<vmem>>, vector<1x128xf32>
    %cst_7 = arith.constant 0.000000e+00 : f32
    %10 = vector.broadcast %cst_7 : f32 to vector<2x128xf32>
    %11 = vector.extract_strided_slice %7 {offsets = [0, 0], sizes = [2, 384], strides = [1, 1]} : vector<16x384xf32> to vector<2x384xf32>
    %cst_8 = arith.constant dense<0.000000e+00> : vector<2x384xf32>
    %12 = tpu.matmul %10, %8, %cst_8 {dimension_numbers = #tpu.dot_dimension_numbers<[1], [0], [0], [1], [0, 0, 1, 1], [], []>} : vector<2x128xf32>, vector<128x384xf32>, vector<2x384xf32> -> vector<2x384xf32>
    %13 = vector.extract_strided_slice %11 {offsets = [0, 0], sizes = [2, 128], strides = [1, 1]} : vector<2x384xf32> to vector<2x128xf32>
    %14 = vector.extract_strided_slice %12 {offsets = [0, 0], sizes = [2, 128], strides = [1, 1]} : vector<2x384xf32> to vector<2x128xf32>
    %15 = arith.addf %13, %14 : vector<2x128xf32>
    %16 = arith.negf %15 : vector<2x128xf32>
    %17 = math.exp %16 : vector<2x128xf32>
    %cst_9 = arith.constant 1.000000e+00 : f32
    %18 = vector.broadcast %cst_9 : f32 to vector<2x128xf32>
    %19 = arith.addf %18, %17 : vector<2x128xf32>
    %20 = arith.divf %18, %19 : vector<2x128xf32>
    %21 = vector.extract_strided_slice %11 {offsets = [0, 128], sizes = [2, 128], strides = [1, 1]} : vector<2x384xf32> to vector<2x128xf32>
    %22 = vector.extract_strided_slice %12 {offsets = [0, 128], sizes = [2, 128], strides = [1, 1]} : vector<2x384xf32> to vector<2x128xf32>
    %23 = arith.addf %21, %22 : vector<2x128xf32>
    %24 = arith.negf %23 : vector<2x128xf32>
    %25 = math.exp %24 : vector<2x128xf32>
    %cst_10 = arith.constant 1.000000e+00 : f32
    %26 = vector.broadcast %cst_10 : f32 to vector<2x128xf32>
    %27 = arith.addf %26, %25 : vector<2x128xf32>
    %28 = arith.divf %26, %27 : vector<2x128xf32>
    %29 = vector.extract_strided_slice %11 {offsets = [0, 256], sizes = [2, 128], strides = [1, 1]} : vector<2x384xf32> to vector<2x128xf32>
    %30 = vector.extract_strided_slice %12 {offsets = [0, 256], sizes = [2, 128], strides = [1, 1]} : vector<2x384xf32> to vector<2x128xf32>
    %31 = vector.broadcast %9 : vector<1x128xf32> to vector<2x128xf32>
    %32 = arith.addf %30, %31 : vector<2x128xf32>
    %33 = arith.mulf %20, %32 : vector<2x128xf32>
    %34 = arith.addf %29, %33 : vector<2x128xf32>
    %35 = math.tanh %34 : vector<2x128xf32>
    %cst_11 = arith.constant 1.000000e+00 : f32
    %36 = vector.broadcast %cst_11 : f32 to vector<2x128xf32>
    %37 = arith.subf %36, %28 : vector<2x128xf32>
    %38 = arith.mulf %37, %35 : vector<2x128xf32>
    %39 = arith.mulf %28, %10 : vector<2x128xf32>
    %40 = arith.addf %38, %39 : vector<2x128xf32>
    %41 = vector.extract_strided_slice %7 {offsets = [2, 0], sizes = [2, 384], strides = [1, 1]} : vector<16x384xf32> to vector<2x384xf32>
    %cst_12 = arith.constant dense<0.000000e+00> : vector<2x384xf32>
    %42 = tpu.matmul %40, %8, %cst_12 {dimension_numbers = #tpu.dot_dimension_numbers<[1], [0], [0], [1], [0, 0, 1, 1], [], []>} : vector<2x128xf32>, vector<128x384xf32>, vector<2x384xf32> -> vector<2x384xf32>
    %43 = vector.extract_strided_slice %41 {offsets = [0, 0], sizes = [2, 128], strides = [1, 1]} : vector<2x384xf32> to vector<2x128xf32>
    %44 = vector.extract_strided_slice %42 {offsets = [0, 0], sizes = [2, 128], strides = [1, 1]} : vector<2x384xf32> to vector<2x128xf32>
    %45 = arith.addf %43, %44 : vector<2x128xf32>
    %46 = arith.negf %45 : vector<2x128xf32>
    %47 = math.exp %46 : vector<2x128xf32>
    %cst_13 = arith.constant 1.000000e+00 : f32
    %48 = vector.broadcast %cst_13 : f32 to vector<2x128xf32>
    %49 = arith.addf %48, %47 : vector<2x128xf32>
    %50 = arith.divf %48, %49 : vector<2x128xf32>
    %51 = vector.extract_strided_slice %41 {offsets = [0, 128], sizes = [2, 128], strides = [1, 1]} : vector<2x384xf32> to vector<2x128xf32>
    %52 = vector.extract_strided_slice %42 {offsets = [0, 128], sizes = [2, 128], strides = [1, 1]} : vector<2x384xf32> to vector<2x128xf32>
    %53 = arith.addf %51, %52 : vector<2x128xf32>
    %54 = arith.negf %53 : vector<2x128xf32>
    %55 = math.exp %54 : vector<2x128xf32>
    %cst_14 = arith.constant 1.000000e+00 : f32
    %56 = vector.broadcast %cst_14 : f32 to vector<2x128xf32>
    %57 = arith.addf %56, %55 : vector<2x128xf32>
    %58 = arith.divf %56, %57 : vector<2x128xf32>
    %59 = vector.extract_strided_slice %41 {offsets = [0, 256], sizes = [2, 128], strides = [1, 1]} : vector<2x384xf32> to vector<2x128xf32>
    %60 = vector.extract_strided_slice %42 {offsets = [0, 256], sizes = [2, 128], strides = [1, 1]} : vector<2x384xf32> to vector<2x128xf32>
    %61 = vector.broadcast %9 : vector<1x128xf32> to vector<2x128xf32>
    %62 = arith.addf %60, %61 : vector<2x128xf32>
    %63 = arith.mulf %50, %62 : vector<2x128xf32>
    %64 = arith.addf %59, %63 : vector<2x128xf32>
    %65 = math.tanh %64 : vector<2x128xf32>
    %cst_15 = arith.constant 1.000000e+00 : f32
    %66 = vector.broadcast %cst_15 : f32 to vector<2x128xf32>
    %67 = arith.subf %66, %58 : vector<2x128xf32>
    %68 = arith.mulf %67, %65 : vector<2x128xf32>
    %69 = arith.mulf %58, %40 : vector<2x128xf32>
    %70 = arith.addf %68, %69 : vector<2x128xf32>
    %71 = vector.extract_strided_slice %7 {offsets = [4, 0], sizes = [2, 384], strides = [1, 1]} : vector<16x384xf32> to vector<2x384xf32>
    %cst_16 = arith.constant dense<0.000000e+00> : vector<2x384xf32>
    %72 = tpu.matmul %70, %8, %cst_16 {dimension_numbers = #tpu.dot_dimension_numbers<[1], [0], [0], [1], [0, 0, 1, 1], [], []>} : vector<2x128xf32>, vector<128x384xf32>, vector<2x384xf32> -> vector<2x384xf32>
    %73 = vector.extract_strided_slice %71 {offsets = [0, 0], sizes = [2, 128], strides = [1, 1]} : vector<2x384xf32> to vector<2x128xf32>
    %74 = vector.extract_strided_slice %72 {offsets = [0, 0], sizes = [2, 128], strides = [1, 1]} : vector<2x384xf32> to vector<2x128xf32>
    %75 = arith.addf %73, %74 : vector<2x128xf32>
    %76 = arith.negf %75 : vector<2x128xf32>
    %77 = math.exp %76 : vector<2x128xf32>
    %cst_17 = arith.constant 1.000000e+00 : f32
    %78 = vector.broadcast %cst_17 : f32 to vector<2x128xf32>
    %79 = arith.addf %78, %77 : vector<2x128xf32>
    %80 = arith.divf %78, %79 : vector<2x128xf32>
    %81 = vector.extract_strided_slice %71 {offsets = [0, 128], sizes = [2, 128], strides = [1, 1]} : vector<2x384xf32> to vector<2x128xf32>
    %82 = vector.extract_strided_slice %72 {offsets = [0, 128], sizes = [2, 128], strides = [1, 1]} : vector<2x384xf32> to vector<2x128xf32>
    %83 = arith.addf %81, %82 : vector<2x128xf32>
    %84 = arith.negf %83 : vector<2x128xf32>
    %85 = math.exp %84 : vector<2x128xf32>
    %cst_18 = arith.constant 1.000000e+00 : f32
    %86 = vector.broadcast %cst_18 : f32 to vector<2x128xf32>
    %87 = arith.addf %86, %85 : vector<2x128xf32>
    %88 = arith.divf %86, %87 : vector<2x128xf32>
    %89 = vector.extract_strided_slice %71 {offsets = [0, 256], sizes = [2, 128], strides = [1, 1]} : vector<2x384xf32> to vector<2x128xf32>
    %90 = vector.extract_strided_slice %72 {offsets = [0, 256], sizes = [2, 128], strides = [1, 1]} : vector<2x384xf32> to vector<2x128xf32>
    %91 = vector.broadcast %9 : vector<1x128xf32> to vector<2x128xf32>
    %92 = arith.addf %90, %91 : vector<2x128xf32>
    %93 = arith.mulf %80, %92 : vector<2x128xf32>
    %94 = arith.addf %89, %93 : vector<2x128xf32>
    %95 = math.tanh %94 : vector<2x128xf32>
    %cst_19 = arith.constant 1.000000e+00 : f32
    %96 = vector.broadcast %cst_19 : f32 to vector<2x128xf32>
    %97 = arith.subf %96, %88 : vector<2x128xf32>
    %98 = arith.mulf %97, %95 : vector<2x128xf32>
    %99 = arith.mulf %88, %70 : vector<2x128xf32>
    %100 = arith.addf %98, %99 : vector<2x128xf32>
    %101 = vector.extract_strided_slice %7 {offsets = [6, 0], sizes = [2, 384], strides = [1, 1]} : vector<16x384xf32> to vector<2x384xf32>
    %cst_20 = arith.constant dense<0.000000e+00> : vector<2x384xf32>
    %102 = tpu.matmul %100, %8, %cst_20 {dimension_numbers = #tpu.dot_dimension_numbers<[1], [0], [0], [1], [0, 0, 1, 1], [], []>} : vector<2x128xf32>, vector<128x384xf32>, vector<2x384xf32> -> vector<2x384xf32>
    %103 = vector.extract_strided_slice %101 {offsets = [0, 0], sizes = [2, 128], strides = [1, 1]} : vector<2x384xf32> to vector<2x128xf32>
    %104 = vector.extract_strided_slice %102 {offsets = [0, 0], sizes = [2, 128], strides = [1, 1]} : vector<2x384xf32> to vector<2x128xf32>
    %105 = arith.addf %103, %104 : vector<2x128xf32>
    %106 = arith.negf %105 : vector<2x128xf32>
    %107 = math.exp %106 : vector<2x128xf32>
    %cst_21 = arith.constant 1.000000e+00 : f32
    %108 = vector.broadcast %cst_21 : f32 to vector<2x128xf32>
    %109 = arith.addf %108, %107 : vector<2x128xf32>
    %110 = arith.divf %108, %109 : vector<2x128xf32>
    %111 = vector.extract_strided_slice %101 {offsets = [0, 128], sizes = [2, 128], strides = [1, 1]} : vector<2x384xf32> to vector<2x128xf32>
    %112 = vector.extract_strided_slice %102 {offsets = [0, 128], sizes = [2, 128], strides = [1, 1]} : vector<2x384xf32> to vector<2x128xf32>
    %113 = arith.addf %111, %112 : vector<2x128xf32>
    %114 = arith.negf %113 : vector<2x128xf32>
    %115 = math.exp %114 : vector<2x128xf32>
    %cst_22 = arith.constant 1.000000e+00 : f32
    %116 = vector.broadcast %cst_22 : f32 to vector<2x128xf32>
    %117 = arith.addf %116, %115 : vector<2x128xf32>
    %118 = arith.divf %116, %117 : vector<2x128xf32>
    %119 = vector.extract_strided_slice %101 {offsets = [0, 256], sizes = [2, 128], strides = [1, 1]} : vector<2x384xf32> to vector<2x128xf32>
    %120 = vector.extract_strided_slice %102 {offsets = [0, 256], sizes = [2, 128], strides = [1, 1]} : vector<2x384xf32> to vector<2x128xf32>
    %121 = vector.broadcast %9 : vector<1x128xf32> to vector<2x128xf32>
    %122 = arith.addf %120, %121 : vector<2x128xf32>
    %123 = arith.mulf %110, %122 : vector<2x128xf32>
    %124 = arith.addf %119, %123 : vector<2x128xf32>
    %125 = math.tanh %124 : vector<2x128xf32>
    %cst_23 = arith.constant 1.000000e+00 : f32
    %126 = vector.broadcast %cst_23 : f32 to vector<2x128xf32>
    %127 = arith.subf %126, %118 : vector<2x128xf32>
    %128 = arith.mulf %127, %125 : vector<2x128xf32>
    %129 = arith.mulf %118, %100 : vector<2x128xf32>
    %130 = arith.addf %128, %129 : vector<2x128xf32>
    %131 = vector.extract_strided_slice %7 {offsets = [8, 0], sizes = [2, 384], strides = [1, 1]} : vector<16x384xf32> to vector<2x384xf32>
    %cst_24 = arith.constant dense<0.000000e+00> : vector<2x384xf32>
    %132 = tpu.matmul %130, %8, %cst_24 {dimension_numbers = #tpu.dot_dimension_numbers<[1], [0], [0], [1], [0, 0, 1, 1], [], []>} : vector<2x128xf32>, vector<128x384xf32>, vector<2x384xf32> -> vector<2x384xf32>
    %133 = vector.extract_strided_slice %131 {offsets = [0, 0], sizes = [2, 128], strides = [1, 1]} : vector<2x384xf32> to vector<2x128xf32>
    %134 = vector.extract_strided_slice %132 {offsets = [0, 0], sizes = [2, 128], strides = [1, 1]} : vector<2x384xf32> to vector<2x128xf32>
    %135 = arith.addf %133, %134 : vector<2x128xf32>
    %136 = arith.negf %135 : vector<2x128xf32>
    %137 = math.exp %136 : vector<2x128xf32>
    %cst_25 = arith.constant 1.000000e+00 : f32
    %138 = vector.broadcast %cst_25 : f32 to vector<2x128xf32>
    %139 = arith.addf %138, %137 : vector<2x128xf32>
    %140 = arith.divf %138, %139 : vector<2x128xf32>
    %141 = vector.extract_strided_slice %131 {offsets = [0, 128], sizes = [2, 128], strides = [1, 1]} : vector<2x384xf32> to vector<2x128xf32>
    %142 = vector.extract_strided_slice %132 {offsets = [0, 128], sizes = [2, 128], strides = [1, 1]} : vector<2x384xf32> to vector<2x128xf32>
    %143 = arith.addf %141, %142 : vector<2x128xf32>
    %144 = arith.negf %143 : vector<2x128xf32>
    %145 = math.exp %144 : vector<2x128xf32>
    %cst_26 = arith.constant 1.000000e+00 : f32
    %146 = vector.broadcast %cst_26 : f32 to vector<2x128xf32>
    %147 = arith.addf %146, %145 : vector<2x128xf32>
    %148 = arith.divf %146, %147 : vector<2x128xf32>
    %149 = vector.extract_strided_slice %131 {offsets = [0, 256], sizes = [2, 128], strides = [1, 1]} : vector<2x384xf32> to vector<2x128xf32>
    %150 = vector.extract_strided_slice %132 {offsets = [0, 256], sizes = [2, 128], strides = [1, 1]} : vector<2x384xf32> to vector<2x128xf32>
    %151 = vector.broadcast %9 : vector<1x128xf32> to vector<2x128xf32>
    %152 = arith.addf %150, %151 : vector<2x128xf32>
    %153 = arith.mulf %140, %152 : vector<2x128xf32>
    %154 = arith.addf %149, %153 : vector<2x128xf32>
    %155 = math.tanh %154 : vector<2x128xf32>
    %cst_27 = arith.constant 1.000000e+00 : f32
    %156 = vector.broadcast %cst_27 : f32 to vector<2x128xf32>
    %157 = arith.subf %156, %148 : vector<2x128xf32>
    %158 = arith.mulf %157, %155 : vector<2x128xf32>
    %159 = arith.mulf %148, %130 : vector<2x128xf32>
    %160 = arith.addf %158, %159 : vector<2x128xf32>
    %161 = vector.extract_strided_slice %7 {offsets = [10, 0], sizes = [2, 384], strides = [1, 1]} : vector<16x384xf32> to vector<2x384xf32>
    %cst_28 = arith.constant dense<0.000000e+00> : vector<2x384xf32>
    %162 = tpu.matmul %160, %8, %cst_28 {dimension_numbers = #tpu.dot_dimension_numbers<[1], [0], [0], [1], [0, 0, 1, 1], [], []>} : vector<2x128xf32>, vector<128x384xf32>, vector<2x384xf32> -> vector<2x384xf32>
    %163 = vector.extract_strided_slice %161 {offsets = [0, 0], sizes = [2, 128], strides = [1, 1]} : vector<2x384xf32> to vector<2x128xf32>
    %164 = vector.extract_strided_slice %162 {offsets = [0, 0], sizes = [2, 128], strides = [1, 1]} : vector<2x384xf32> to vector<2x128xf32>
    %165 = arith.addf %163, %164 : vector<2x128xf32>
    %166 = arith.negf %165 : vector<2x128xf32>
    %167 = math.exp %166 : vector<2x128xf32>
    %cst_29 = arith.constant 1.000000e+00 : f32
    %168 = vector.broadcast %cst_29 : f32 to vector<2x128xf32>
    %169 = arith.addf %168, %167 : vector<2x128xf32>
    %170 = arith.divf %168, %169 : vector<2x128xf32>
    %171 = vector.extract_strided_slice %161 {offsets = [0, 128], sizes = [2, 128], strides = [1, 1]} : vector<2x384xf32> to vector<2x128xf32>
    %172 = vector.extract_strided_slice %162 {offsets = [0, 128], sizes = [2, 128], strides = [1, 1]} : vector<2x384xf32> to vector<2x128xf32>
    %173 = arith.addf %171, %172 : vector<2x128xf32>
    %174 = arith.negf %173 : vector<2x128xf32>
    %175 = math.exp %174 : vector<2x128xf32>
    %cst_30 = arith.constant 1.000000e+00 : f32
    %176 = vector.broadcast %cst_30 : f32 to vector<2x128xf32>
    %177 = arith.addf %176, %175 : vector<2x128xf32>
    %178 = arith.divf %176, %177 : vector<2x128xf32>
    %179 = vector.extract_strided_slice %161 {offsets = [0, 256], sizes = [2, 128], strides = [1, 1]} : vector<2x384xf32> to vector<2x128xf32>
    %180 = vector.extract_strided_slice %162 {offsets = [0, 256], sizes = [2, 128], strides = [1, 1]} : vector<2x384xf32> to vector<2x128xf32>
    %181 = vector.broadcast %9 : vector<1x128xf32> to vector<2x128xf32>
    %182 = arith.addf %180, %181 : vector<2x128xf32>
    %183 = arith.mulf %170, %182 : vector<2x128xf32>
    %184 = arith.addf %179, %183 : vector<2x128xf32>
    %185 = math.tanh %184 : vector<2x128xf32>
    %cst_31 = arith.constant 1.000000e+00 : f32
    %186 = vector.broadcast %cst_31 : f32 to vector<2x128xf32>
    %187 = arith.subf %186, %178 : vector<2x128xf32>
    %188 = arith.mulf %187, %185 : vector<2x128xf32>
    %189 = arith.mulf %178, %160 : vector<2x128xf32>
    %190 = arith.addf %188, %189 : vector<2x128xf32>
    %191 = vector.extract_strided_slice %7 {offsets = [12, 0], sizes = [2, 384], strides = [1, 1]} : vector<16x384xf32> to vector<2x384xf32>
    %cst_32 = arith.constant dense<0.000000e+00> : vector<2x384xf32>
    %192 = tpu.matmul %190, %8, %cst_32 {dimension_numbers = #tpu.dot_dimension_numbers<[1], [0], [0], [1], [0, 0, 1, 1], [], []>} : vector<2x128xf32>, vector<128x384xf32>, vector<2x384xf32> -> vector<2x384xf32>
    %193 = vector.extract_strided_slice %191 {offsets = [0, 0], sizes = [2, 128], strides = [1, 1]} : vector<2x384xf32> to vector<2x128xf32>
    %194 = vector.extract_strided_slice %192 {offsets = [0, 0], sizes = [2, 128], strides = [1, 1]} : vector<2x384xf32> to vector<2x128xf32>
    %195 = arith.addf %193, %194 : vector<2x128xf32>
    %196 = arith.negf %195 : vector<2x128xf32>
    %197 = math.exp %196 : vector<2x128xf32>
    %cst_33 = arith.constant 1.000000e+00 : f32
    %198 = vector.broadcast %cst_33 : f32 to vector<2x128xf32>
    %199 = arith.addf %198, %197 : vector<2x128xf32>
    %200 = arith.divf %198, %199 : vector<2x128xf32>
    %201 = vector.extract_strided_slice %191 {offsets = [0, 128], sizes = [2, 128], strides = [1, 1]} : vector<2x384xf32> to vector<2x128xf32>
    %202 = vector.extract_strided_slice %192 {offsets = [0, 128], sizes = [2, 128], strides = [1, 1]} : vector<2x384xf32> to vector<2x128xf32>
    %203 = arith.addf %201, %202 : vector<2x128xf32>
    %204 = arith.negf %203 : vector<2x128xf32>
    %205 = math.exp %204 : vector<2x128xf32>
    %cst_34 = arith.constant 1.000000e+00 : f32
    %206 = vector.broadcast %cst_34 : f32 to vector<2x128xf32>
    %207 = arith.addf %206, %205 : vector<2x128xf32>
    %208 = arith.divf %206, %207 : vector<2x128xf32>
    %209 = vector.extract_strided_slice %191 {offsets = [0, 256], sizes = [2, 128], strides = [1, 1]} : vector<2x384xf32> to vector<2x128xf32>
    %210 = vector.extract_strided_slice %192 {offsets = [0, 256], sizes = [2, 128], strides = [1, 1]} : vector<2x384xf32> to vector<2x128xf32>
    %211 = vector.broadcast %9 : vector<1x128xf32> to vector<2x128xf32>
    %212 = arith.addf %210, %211 : vector<2x128xf32>
    %213 = arith.mulf %200, %212 : vector<2x128xf32>
    %214 = arith.addf %209, %213 : vector<2x128xf32>
    %215 = math.tanh %214 : vector<2x128xf32>
    %cst_35 = arith.constant 1.000000e+00 : f32
    %216 = vector.broadcast %cst_35 : f32 to vector<2x128xf32>
    %217 = arith.subf %216, %208 : vector<2x128xf32>
    %218 = arith.mulf %217, %215 : vector<2x128xf32>
    %219 = arith.mulf %208, %190 : vector<2x128xf32>
    %220 = arith.addf %218, %219 : vector<2x128xf32>
    %221 = vector.extract_strided_slice %7 {offsets = [14, 0], sizes = [2, 384], strides = [1, 1]} : vector<16x384xf32> to vector<2x384xf32>
    %cst_36 = arith.constant dense<0.000000e+00> : vector<2x384xf32>
    %222 = tpu.matmul %220, %8, %cst_36 {dimension_numbers = #tpu.dot_dimension_numbers<[1], [0], [0], [1], [0, 0, 1, 1], [], []>} : vector<2x128xf32>, vector<128x384xf32>, vector<2x384xf32> -> vector<2x384xf32>
    %223 = vector.extract_strided_slice %221 {offsets = [0, 0], sizes = [2, 128], strides = [1, 1]} : vector<2x384xf32> to vector<2x128xf32>
    %224 = vector.extract_strided_slice %222 {offsets = [0, 0], sizes = [2, 128], strides = [1, 1]} : vector<2x384xf32> to vector<2x128xf32>
    %225 = arith.addf %223, %224 : vector<2x128xf32>
    %226 = arith.negf %225 : vector<2x128xf32>
    %227 = math.exp %226 : vector<2x128xf32>
    %cst_37 = arith.constant 1.000000e+00 : f32
    %228 = vector.broadcast %cst_37 : f32 to vector<2x128xf32>
    %229 = arith.addf %228, %227 : vector<2x128xf32>
    %230 = arith.divf %228, %229 : vector<2x128xf32>
    %231 = vector.extract_strided_slice %221 {offsets = [0, 128], sizes = [2, 128], strides = [1, 1]} : vector<2x384xf32> to vector<2x128xf32>
    %232 = vector.extract_strided_slice %222 {offsets = [0, 128], sizes = [2, 128], strides = [1, 1]} : vector<2x384xf32> to vector<2x128xf32>
    %233 = arith.addf %231, %232 : vector<2x128xf32>
    %234 = arith.negf %233 : vector<2x128xf32>
    %235 = math.exp %234 : vector<2x128xf32>
    %cst_38 = arith.constant 1.000000e+00 : f32
    %236 = vector.broadcast %cst_38 : f32 to vector<2x128xf32>
    %237 = arith.addf %236, %235 : vector<2x128xf32>
    %238 = arith.divf %236, %237 : vector<2x128xf32>
    %239 = vector.extract_strided_slice %221 {offsets = [0, 256], sizes = [2, 128], strides = [1, 1]} : vector<2x384xf32> to vector<2x128xf32>
    %240 = vector.extract_strided_slice %222 {offsets = [0, 256], sizes = [2, 128], strides = [1, 1]} : vector<2x384xf32> to vector<2x128xf32>
    %241 = vector.broadcast %9 : vector<1x128xf32> to vector<2x128xf32>
    %242 = arith.addf %240, %241 : vector<2x128xf32>
    %243 = arith.mulf %230, %242 : vector<2x128xf32>
    %244 = arith.addf %239, %243 : vector<2x128xf32>
    %245 = math.tanh %244 : vector<2x128xf32>
    %cst_39 = arith.constant 1.000000e+00 : f32
    %246 = vector.broadcast %cst_39 : f32 to vector<2x128xf32>
    %247 = arith.subf %246, %238 : vector<2x128xf32>
    %248 = arith.mulf %247, %245 : vector<2x128xf32>
    %249 = arith.mulf %238, %220 : vector<2x128xf32>
    %250 = arith.addf %248, %249 : vector<2x128xf32>
    %c0_40 = arith.constant 0 : index
    %c0_41 = arith.constant 0 : index
    %c0_42 = arith.constant 0 : index
    %251 = vector.load %arg4[%c0_40, %c0_41, %c0_42] : memref<2x8x64xf32, #tpu.memory_space<vmem>>, vector<2x8x64xf32>
    %252 = vector.shape_cast %251 : vector<2x8x64xf32> to vector<16x64xf32>
    %c0_43 = arith.constant 0 : index
    %c0_44 = arith.constant 0 : index
    %253 = vector.load %arg5[%c0_43, %c0_44] : memref<64x128xf32, #tpu.memory_space<vmem>>, vector<64x128xf32>
    %cst_45 = arith.constant dense<0.000000e+00> : vector<16x128xf32>
    %254 = tpu.matmul %252, %253, %cst_45 {dimension_numbers = #tpu.dot_dimension_numbers<[1], [0], [0], [1], [0, 0, 1, 1], [], []>} : vector<16x64xf32>, vector<64x128xf32>, vector<16x128xf32> -> vector<16x128xf32>
    %c0_46 = arith.constant 0 : index
    %c0_47 = arith.constant 0 : index
    %255 = vector.load %arg6[%c0_46, %c0_47] : memref<128x128xf32, #tpu.memory_space<vmem>>, vector<128x128xf32>
    %cst_48 = arith.constant dense<0.000000e+00> : vector<2x128xf32>
    %256 = tpu.matmul %250, %255, %cst_48 {dimension_numbers = #tpu.dot_dimension_numbers<[1], [0], [0], [1], [0, 0, 1, 1], [], []>} : vector<2x128xf32>, vector<128x128xf32>, vector<2x128xf32> -> vector<2x128xf32>
    %257 = vector.shape_cast %254 : vector<16x128xf32> to vector<2x8x128xf32>
    %258 = vector.shape_cast %256 : vector<2x128xf32> to vector<2x1x128xf32>
    %259 = vector.broadcast %258 : vector<2x1x128xf32> to vector<2x8x128xf32>
    %260 = arith.addf %257, %259 : vector<2x8x128xf32>
    %c0_49 = arith.constant 0 : index
    %c0_50 = arith.constant 0 : index
    %261 = vector.load %arg7[%c0_49, %c0_50] : memref<1x128xf32, #tpu.memory_space<vmem>>, vector<1x128xf32>
    %262 = vector.shape_cast %261 : vector<1x128xf32> to vector<1x1x128xf32>
    %263 = vector.broadcast %262 : vector<1x1x128xf32> to vector<2x8x128xf32>
    %264 = arith.addf %260, %263 : vector<2x8x128xf32>
    %cst_51 = arith.constant 0.000000e+00 : f32
    %265 = vector.broadcast %cst_51 : f32 to vector<2x8x128xf32>
    %266 = arith.maximumf %264, %265 : vector<2x8x128xf32>
    %c0_52 = arith.constant 0 : index
    %c0_53 = arith.constant 0 : index
    %267 = vector.load %arg8[%c0_52, %c0_53] : memref<1x128xf32, #tpu.memory_space<vmem>>, vector<1x128xf32>
    %268 = vector.shape_cast %267 : vector<1x128xf32> to vector<1x1x128xf32>
    %269 = vector.broadcast %268 : vector<1x1x128xf32> to vector<2x8x128xf32>
    %270 = arith.mulf %266, %269 : vector<2x8x128xf32>
    %cst_54 = arith.constant dense<0.000000e+00> : vector<2x8xf32>
    %271 = vector.multi_reduction <add>, %270, %cst_54 [2] : vector<2x8x128xf32> to vector<2x8xf32>
    %cst_55 = arith.constant dense<0xFF800000> : vector<2xf32>
    %272 = vector.multi_reduction <maximumf>, %271, %cst_55 [1] : vector<2x8xf32> to vector<2xf32>
    %273 = vector.shape_cast %272 : vector<2xf32> to vector<2x1xf32>
    %274 = vector.broadcast %273 : vector<2x1xf32> to vector<2x8xf32>
    %275 = arith.subf %271, %274 : vector<2x8xf32>
    %276 = math.exp %275 : vector<2x8xf32>
    %cst_56 = arith.constant dense<0.000000e+00> : vector<2xf32>
    %277 = vector.multi_reduction <add>, %276, %cst_56 [1] : vector<2x8xf32> to vector<2xf32>
    %278 = vector.shape_cast %277 : vector<2xf32> to vector<2x1xf32>
    %279 = tpu.reciprocal %278 {approx = true} : vector<2x1xf32> -> vector<2x1xf32>
    %280 = arith.mulf %278, %279 : vector<2x1xf32>
    %cst_57 = arith.constant 2.000000e+00 : f32
    %281 = vector.broadcast %cst_57 : f32 to vector<2x1xf32>
    %282 = arith.subf %281, %280 : vector<2x1xf32>
    %283 = arith.mulf %279, %282 : vector<2x1xf32>
    %284 = vector.broadcast %283 : vector<2x1xf32> to vector<2x8xf32>
    %285 = arith.mulf %276, %284 : vector<2x8xf32>
    %286 = vector.shape_cast %285 : vector<2x8xf32> to vector<2x1x8xf32>
    "tpu.trace_start"() <{level = 10 : i32, message = "bqn,bnv->bqv"}> : () -> ()
    %cst_58 = arith.constant dense<0.000000e+00> : vector<2x1x64xf32>
    %287 = tpu.matmul %286, %251, %cst_58 {dimension_numbers = #tpu.dot_dimension_numbers<[2], [1], [1], [2], [0, 0, 0, 1, 1, 2], [0], [0]>} : vector<2x1x8xf32>, vector<2x8x64xf32>, vector<2x1x64xf32> -> vector<2x1x64xf32>
    "tpu.trace_stop"() : () -> ()
    %288 = vector.shape_cast %287 : vector<2x1x64xf32> to vector<2x64xf32>
    %c0_59 = arith.constant 0 : index
    %c0_60 = arith.constant 0 : index
    %289 = vector.load %arg9[%c0_59, %c0_60] : memref<128x128xf32, #tpu.memory_space<vmem>>, vector<128x128xf32>
    %cst_61 = arith.constant dense<0.000000e+00> : vector<2x128xf32>
    %290 = tpu.matmul %250, %289, %cst_61 {dimension_numbers = #tpu.dot_dimension_numbers<[1], [0], [0], [1], [0, 0, 1, 1], [], []>} : vector<2x128xf32>, vector<128x128xf32>, vector<2x128xf32> -> vector<2x128xf32>
    %c0_62 = arith.constant 0 : index
    %c0_63 = arith.constant 0 : index
    %291 = vector.load %arg10[%c0_62, %c0_63] : memref<1x128xf32, #tpu.memory_space<vmem>>, vector<1x128xf32>
    %292 = vector.broadcast %291 : vector<1x128xf32> to vector<2x128xf32>
    %293 = arith.addf %290, %292 : vector<2x128xf32>
    %cst_64 = arith.constant 0.000000e+00 : f32
    %294 = vector.broadcast %cst_64 : f32 to vector<2x128xf32>
    %295 = arith.maximumf %293, %294 : vector<2x128xf32>
    %c0_65 = arith.constant 0 : index
    %c0_66 = arith.constant 0 : index
    %296 = vector.load %arg11[%c0_65, %c0_66] : memref<64x128xf32, #tpu.memory_space<vmem>>, vector<64x128xf32>
    %cst_67 = arith.constant dense<0.000000e+00> : vector<2x128xf32>
    %297 = tpu.matmul %288, %296, %cst_67 {dimension_numbers = #tpu.dot_dimension_numbers<[1], [0], [0], [1], [0, 0, 1, 1], [], []>} : vector<2x64xf32>, vector<64x128xf32>, vector<2x128xf32> -> vector<2x128xf32>
    %c0_68 = arith.constant 0 : index
    %c0_69 = arith.constant 0 : index
    %298 = vector.load %arg12[%c0_68, %c0_69] : memref<1x128xf32, #tpu.memory_space<vmem>>, vector<1x128xf32>
    %299 = vector.broadcast %298 : vector<1x128xf32> to vector<2x128xf32>
    %300 = arith.addf %297, %299 : vector<2x128xf32>
    %cst_70 = arith.constant 0.000000e+00 : f32
    %301 = vector.broadcast %cst_70 : f32 to vector<2x128xf32>
    %302 = arith.maximumf %300, %301 : vector<2x128xf32>
    %303 = arith.mulf %295, %302 : vector<2x128xf32>
    %c0_71 = arith.constant 0 : index
    %c0_72 = arith.constant 0 : index
    %304 = vector.load %arg13[%c0_71, %c0_72] : memref<2x128xf32, #tpu.memory_space<vmem>>, vector<2x128xf32>
    tpu.vector_store %arg13[%c0_71, %c0_72], %303 {strides = array<i32>} : memref<2x128xf32, #tpu.memory_space<vmem>>, vector<2x128xf32>,
    return
  }
}

</mosaic_0001>

<llo_original>
// kernel: tpu_custom_call.1
$region0: #{tpu_custom_call.1}
  #allocation0 [shape = 'u32[]', space=smem, size = 0x4, offset = 0x4, fixed_abs, tag = 'smem constant byte address 0x4 - core index']
  #allocation1 [shape = 'u32[144,128]{1,0:T(1,128)}', space=vmem, size = 0x12000, scoped, tag = 'internal scratch']
  %s0 = inlined_call_operand.vmem [shape: s32[16,1], index: 0, kind: input, shape index: {}]
  %s1 = inlined_call_operand.hbm [shape: f32[50,384], index: 1, kind: input, shape index: {}]
  %s2 = inlined_call_operand.hbm [shape: f32[128,384], index: 2, kind: input, shape index: {}]
  %s3 = inlined_call_operand.vmem [shape: f32[1,128], index: 3, kind: input, shape index: {}]
  %s4 = inlined_call_operand.vmem [shape: f32[2,8,64], index: 4, kind: input, shape index: {}]
  %s5 = inlined_call_operand.hbm [shape: f32[64,128], index: 5, kind: input, shape index: {}]
  %s6 = inlined_call_operand.hbm [shape: f32[128,128], index: 6, kind: input, shape index: {}]
  %s7 = inlined_call_operand.vmem [shape: f32[1,128], index: 7, kind: input, shape index: {}]
  %s8 = inlined_call_operand.vmem [shape: f32[1,128], index: 8, kind: input, shape index: {}]
  %s9 = inlined_call_operand.hbm [shape: f32[128,128], index: 9, kind: input, shape index: {}]
  %s10 = inlined_call_operand.vmem [shape: f32[1,128], index: 10, kind: input, shape index: {}]
  %s11 = inlined_call_operand.hbm [shape: f32[64,128], index: 11, kind: input, shape index: {}]
  %s12 = inlined_call_operand.vmem [shape: f32[1,128], index: 12, kind: input, shape index: {}]
  %s13 = inlined_call_operand.hbm [shape: f32[2,128], index: 13, kind: output, shape index: {}]
  %s14 = sld [smem:[#allocation0]]
  $region86: #{tpu_custom_call.1} parent=0
    _
  %s16 = ssub.s32 1, %s14
  %s17 = scalar_select 0, %s16, %s14
  $region1: #{tpu_custom_call.1} parent=0
    #allocation2 [shape = 'u8[86016]{0}', space=vmem, size = 0x15000, scoped, tag = 'input window, operand 1, single buffered']
    #allocation3 [shape = 's32[1]{0}', space=sflag, size = 0x4, scoped, tag = 'scoped memory for tpu_custom_call.1']
    #allocation4 [shape = 's32[1]{0}', space=sflag, size = 0x4, scoped, tag = 'scoped memory for tpu_custom_call.1']
    #allocation5 [shape = 'u8[196608]{0}', space=vmem, size = 0x30000, scoped, tag = 'input window, operand 2, single buffered']
    #allocation6 [shape = 's32[1]{0}', space=sflag, size = 0x4, scoped, tag = 'scoped memory for tpu_custom_call.1']
    #allocation7 [shape = 'u8[32768]{0}', space=vmem, size = 0x8000, scoped, tag = 'input window, operand 5, single buffered']
    #allocation8 [shape = 'u8[65536]{0}', space=vmem, size = 0x10000, scoped, tag = 'input window, operand 6, single buffered']
    #allocation9 [shape = 's32[1]{0}', space=sflag, size = 0x4, scoped, tag = 'scoped memory for tpu_custom_call.1']
    #allocation10 [shape = 'u8[65536]{0}', space=vmem, size = 0x10000, scoped, tag = 'input window, operand 9, single buffered']
    #allocation11 [shape = 'u8[32768]{0}', space=vmem, size = 0x8000, scoped, tag = 'input window, operand 11, single buffered']
    #allocation12 [shape = 's32[1]{0}', space=sflag, size = 0x4, scoped, tag = 'scoped memory for tpu_custom_call.1']
    #allocation13 [shape = 'u8[1024]{0}', space=vmem, size = 0x400, scoped, tag = 'output window, operand 0, single buffered']
    %18 = vsyncpa [#allocation3], 0
    %19 = vsyncpa [#allocation6], 0
    %20 = vsyncpa [#allocation9], 0
    %21 = vsyncpa [#allocation12], 0
    %22 = vsyncpa [#allocation4], 0
    // Predicated region
    $region2: #{tpu_custom_call.1} parent=1 // pred_check
      _
    $region3: #{tpu_custom_call.1} parent=1 // pred_check_branch
      %24 = sbr.rel (0) target = $region5
    $region4: #{tpu_custom_call.1} parent=1 // pred_region
      _
    $region5: #{tpu_custom_call.1} parent=1 // pred_fallthru
      _
    // Predicated region
    $region6: #{tpu_custom_call.1} parent=1 // pred_check
      _
    $region7: #{tpu_custom_call.1} parent=1 // pred_check_branch
      %26 = sbr.rel (0) target = $region9
    $region8: #{tpu_custom_call.1} parent=1 // pred_region
      %s28 = ssub.s32 2688, 2688
      %29 = vsyncadd [#allocation3], %s28
      %s30 = sshll.u32 [#allocation2], 4
      %s31 = int_to_ptr.vmem [resolvable:$true] %s30
      %36 = dma.hbm_to_vmem [thread:$0]  %s1, 2688, %s31, [#allocation3], 384, 384, 24
    $region9: #{tpu_custom_call.1} parent=1 // pred_fallthru
      _
    // Predicated region
    $region10: #{tpu_custom_call.1} parent=1 // pred_check
      _
    $region11: #{tpu_custom_call.1} parent=1 // pred_check_branch
      %38 = sbr.rel (0) target = $region13
    $region12: #{tpu_custom_call.1} parent=1 // pred_region
      %s40 = ssub.s32 6144, 6144
      %41 = vsyncadd [#allocation6], %s40
      %s42 = sshll.u32 [#allocation5], 4
      %s43 = int_to_ptr.vmem [resolvable:$true] %s42
      %48 = dma.hbm_to_vmem [thread:$0]  %s2, 6144, %s43, [#allocation6], 384, 384, 24
    $region13: #{tpu_custom_call.1} parent=1 // pred_fallthru
      _
    // Predicated region
    $region14: #{tpu_custom_call.1} parent=1 // pred_check
      _
    $region15: #{tpu_custom_call.1} parent=1 // pred_check_branch
      %50 = sbr.rel (0) target = $region17
    $region16: #{tpu_custom_call.1} parent=1 // pred_region
      _
    $region17: #{tpu_custom_call.1} parent=1 // pred_fallthru
      _
    // Predicated region
    $region18: #{tpu_custom_call.1} parent=1 // pred_check
      _
    $region19: #{tpu_custom_call.1} parent=1 // pred_check_branch
      %52 = sbr.rel (0) target = $region21
    $region20: #{tpu_custom_call.1} parent=1 // pred_region
      _
    $region21: #{tpu_custom_call.1} parent=1 // pred_fallthru
      _
    // Predicated region
    $region22: #{tpu_custom_call.1} parent=1 // pred_check
      _
    $region23: #{tpu_custom_call.1} parent=1 // pred_check_branch
      %54 = sbr.rel (0) target = $region25
    $region24: #{tpu_custom_call.1} parent=1 // pred_region
      %s56 = ssub.s32 1024, 1024
      %57 = vsyncadd [#allocation6], %s56
      %s58 = sshll.u32 [#allocation7], 4
      %s59 = int_to_ptr.vmem [resolvable:$true] %s58
      %64 = dma.hbm_to_vmem [thread:$0]  %s5, 1024, %s59, [#allocation6], 128, 128, 8
    $region25: #{tpu_custom_call.1} parent=1 // pred_fallthru
      _
    // Predicated region
    $region26: #{tpu_custom_call.1} parent=1 // pred_check
      _
    $region27: #{tpu_custom_call.1} parent=1 // pred_check_branch
      %66 = sbr.rel (0) target = $region29
    $region28: #{tpu_custom_call.1} parent=1 // pred_region
      %s68 = ssub.s32 2048, 2048
      %69 = vsyncadd [#allocation9], %s68
      %s70 = sshll.u32 [#allocation8], 4
      %s71 = int_to_ptr.vmem [resolvable:$true] %s70
      %76 = dma.hbm_to_vmem [thread:$0]  %s6, 2048, %s71, [#allocation9], 128, 128, 8
    $region29: #{tpu_custom_call.1} parent=1 // pred_fallthru
      _
    // Predicated region
    $region30: #{tpu_custom_call.1} parent=1 // pred_check
      _
    $region31: #{tpu_custom_call.1} parent=1 // pred_check_branch
      %78 = sbr.rel (0) target = $region33
    $region32: #{tpu_custom_call.1} parent=1 // pred_region
      _
    $region33: #{tpu_custom_call.1} parent=1 // pred_fallthru
      _
    // Predicated region
    $region34: #{tpu_custom_call.1} parent=1 // pred_check
      _
    $region35: #{tpu_custom_call.1} parent=1 // pred_check_branch
      %80 = sbr.rel (0) target = $region37
    $region36: #{tpu_custom_call.1} parent=1 // pred_region
      _
    $region37: #{tpu_custom_call.1} parent=1 // pred_fallthru
      _
    // Predicated region
    $region38: #{tpu_custom_call.1} parent=1 // pred_check
      _
    $region39: #{tpu_custom_call.1} parent=1 // pred_check_branch
      %82 = sbr.rel (0) target = $region41
    $region40: #{tpu_custom_call.1} parent=1 // pred_region
      %s84 = ssub.s32 2048, 2048
      %85 = vsyncadd [#allocation9], %s84
      %s86 = sshll.u32 [#allocation10], 4
      %s87 = int_to_ptr.vmem [resolvable:$true] %s86
      %92 = dma.hbm_to_vmem [thread:$0]  %s9, 2048, %s87, [#allocation9], 128, 128, 8
    $region41: #{tpu_custom_call.1} parent=1 // pred_fallthru
      _
    // Predicated region
    $region42: #{tpu_custom_call.1} parent=1 // pred_check
      _
    $region43: #{tpu_custom_call.1} parent=1 // pred_check_branch
      %94 = sbr.rel (0) target = $region45
    $region44: #{tpu_custom_call.1} parent=1 // pred_region
      _
    $region45: #{tpu_custom_call.1} parent=1 // pred_fallthru
      _
    // Predicated region
    $region46: #{tpu_custom_call.1} parent=1 // pred_check
      _
    $region47: #{tpu_custom_call.1} parent=1 // pred_check_branch
      %96 = sbr.rel (0) target = $region49
    $region48: #{tpu_custom_call.1} parent=1 // pred_region
      %s98 = ssub.s32 1024, 1024
      %99 = vsyncadd [#allocation12], %s98
      %s100 = sshll.u32 [#allocation11], 4
      %s101 = int_to_ptr.vmem [resolvable:$true] %s100
      %106 = dma.hbm_to_vmem [thread:$0]  %s11, 1024, %s101, [#allocation12], 128, 128, 8
    $region49: #{tpu_custom_call.1} parent=1 // pred_fallthru
      _
    // Predicated region
    $region50: #{tpu_custom_call.1} parent=1 // pred_check
      _
    $region51: #{tpu_custom_call.1} parent=1 // pred_check_branch
      %108 = sbr.rel (0) target = $region53
    $region52: #{tpu_custom_call.1} parent=1 // pred_region
      _
    $region53: #{tpu_custom_call.1} parent=1 // pred_fallthru
      _
    // Predicated region
    $region54: #{tpu_custom_call.1} parent=1 // pred_check
      _
    $region55: #{tpu_custom_call.1} parent=1 // pred_check_branch
      %110 = sbr.rel (0) target = $region57
    $region56: #{tpu_custom_call.1} parent=1 // pred_region
      %111 = dma.done [#allocation3], 2688
    $region57: #{tpu_custom_call.1} parent=1 // pred_fallthru
      _
    // Predicated region
    $region58: #{tpu_custom_call.1} parent=1 // pred_check
      _
    $region59: #{tpu_custom_call.1} parent=1 // pred_check_branch
      %113 = sbr.rel (0) target = $region61
    $region60: #{tpu_custom_call.1} parent=1 // pred_region
      %114 = dma.done [#allocation6], 6144
    $region61: #{tpu_custom_call.1} parent=1 // pred_fallthru
      _
    // Predicated region
    $region62: #{tpu_custom_call.1} parent=1 // pred_check
      _
    $region63: #{tpu_custom_call.1} parent=1 // pred_check_branch
      %116 = sbr.rel (0) target = $region65
    $region64: #{tpu_custom_call.1} parent=1 // pred_region
      %117 = dma.done [#allocation6], 1024
    $region65: #{tpu_custom_call.1} parent=1 // pred_fallthru
      _
    // Predicated region
    $region66: #{tpu_custom_call.1} parent=1 // pred_check
      _
    $region67: #{tpu_custom_call.1} parent=1 // pred_check_branch
      %119 = sbr.rel (0) target = $region69
    $region68: #{tpu_custom_call.1} parent=1 // pred_region
      %120 = dma.done [#allocation9], 2048
    $region69: #{tpu_custom_call.1} parent=1 // pred_fallthru
      _
    // Predicated region
    $region70: #{tpu_custom_call.1} parent=1 // pred_check
      _
    $region71: #{tpu_custom_call.1} parent=1 // pred_check_branch
      %122 = sbr.rel (0) target = $region73
    $region72: #{tpu_custom_call.1} parent=1 // pred_region
      %123 = dma.done [#allocation9], 2048
    $region73: #{tpu_custom_call.1} parent=1 // pred_fallthru
      _
    // Predicated region
    $region74: #{tpu_custom_call.1} parent=1 // pred_check
      _
    $region75: #{tpu_custom_call.1} parent=1 // pred_check_branch
      %125 = sbr.rel (0) target = $region77
    $region76: #{tpu_custom_call.1} parent=1 // pred_region
      %126 = dma.done [#allocation12], 1024
    $region77: #{tpu_custom_call.1} parent=1 // pred_fallthru
      _
    %v127 = vld [vmem:[%s0] sm:$0xff]
    %v128 = vld [vmem:[%s0 + $0x8] sm:$0xff]
    %v129 = vlaneseq
    %v130 = vand.u32 %v129, 127
    %131 = vset.pattern.permute.xlu0 0
    %132 = vperm.xlu0 %131, %v127
    %v133 = vpop.permute.xlu0 %132
    %134 = vset.pattern.permute.xlu0 0
    %135 = vperm.xlu0 %134, %v128
    %v136 = vpop.permute.xlu0 %135
    %vm137 = vcmp.eq.s32.totalorder %v133, %v130
    %vm138 = vcmp.eq.s32.totalorder %v136, %v130
    %v139 = vsel %vm137, 1, 0
    %v140 = vsel %vm138, 1, 0
    %v141 = vcvt.s32.f32 %v139
    %v142 = vcvt.s32.f32 %v140
    %v143 = vld [vmem:[#allocation2] sm:$0xff]
    %v144 = vld [vmem:[#allocation2 + $0x8] sm:$0xff]
    %v145 = vld [vmem:[#allocation2 + $0x10] sm:$0xff]
    %v146 = vld [vmem:[#allocation2 + $0x18] sm:$0xff]
    %v147 = vld [vmem:[#allocation2 + $0x20] sm:$0xff]
    %v148 = vld [vmem:[#allocation2 + $0x28] sm:$0xff]
    %v149 = vld [vmem:[#allocation2 + $0x30] sm:$0xff]
    %v150 = vld [vmem:[#allocation2 + $0x38] sm:$0xff]
    %v151 = vld [vmem:[#allocation2 + $0x40] sm:$0xff]
    %v152 = vld [vmem:[#allocation2 + $0x48] sm:$0xff]
    %v153 = vld [vmem:[#allocation2 + $0x50] sm:$0xff]
    %v154 = vld [vmem:[#allocation2 + $0x58] sm:$0xff]
    %v155 = vld [vmem:[#allocation2 + $0x60] sm:$0xff]
    %v156 = vld [vmem:[#allocation2 + $0x68] sm:$0xff]
    %v157 = vld [vmem:[#allocation2 + $0x70] sm:$0xff]
    %v158 = vld [vmem:[#allocation2 + $0x78] sm:$0xff]
    %v159 = vld [vmem:[#allocation2 + $0x80] sm:$0xff]
    %v160 = vld [vmem:[#allocation2 + $0x88] sm:$0xff]
    %v161 = vld [vmem:[#allocation2 + $0x90] sm:$0x3]
    %v162 = vld [vmem:[#allocation2 + $0x98] sm:$0x3]
    %v163 = vld [vmem:[#allocation2 + $0xa0] sm:$0x3]
    %vm164 = vcmask 408576
    %v166 = vsel %vm164, %v141, 0
    %v169 = vsel %vm164, %v142, 0
    %vm171 = vcmask 1041408
    %v173 = vsel %vm171, %v161, 0
    %v176 = vsel %vm171, %v162, 0
    %v179 = vsel %vm171, %v163, 0
    %181 = vmatprep.subr.mxu0 %v144
    %182 = vmatpush1.msra.mxu0 %v143
    %183 = vmatprep.subr.mxu0 %v147
    %184 = vmatpush1.msra.mxu0 %v146
    %185 = vmatprep.subr.mxu0 %v150
    %186 = vmatpush1.msra.mxu0 %v149
    %187 = vmatprep.subr.mxu0 %v153
    %188 = vmatpush1.msra.mxu0 %v152
    %189 = vmatprep.subr.mxu0 %v156
    %190 = vmatpush1.msra.mxu0 %v155
    %191 = vmatprep.subr.mxu0 %v159
    %192 = vmatpush1.msra.mxu0 %v158
    %193 = vmatprep.subr.mxu0 %v176
    %194 = vmatpush1.msra.mxu0 %v173
    %195 = vmatprep.subr.mxu0 0.0
    %196 = vmatpush1.msra.mxu0 0.0
    %197 = vmatprep.subr.mxu0 0.0
    %198 = vmatpush1.msra.mxu0 0.0
    %199 = vmatprep.subr.mxu0 0.0
    %200 = vmatpush1.msra.mxu0 0.0
    %201 = vmatprep.subr.mxu0 0.0
    %202 = vmatpush1.msra.mxu0 0.0
    %203 = vmatprep.subr.mxu0 0.0
    %204 = vmatpush1.msra.mxu0 0.0
    %205 = vmatprep.subr.mxu0 0.0
    %206 = vmatpush1.msra.mxu0 0.0
    %207 = vmatprep.subr.mxu0 0.0
    %208 = vmatpush1.msra.mxu0 0.0
    %209 = vmatprep.subr.mxu0 0.0
    %210 = vmatpush1.msra.mxu0 0.0
    %211 = vmatprep.subr.mxu0 0.0
    %212 = vmatpush1.msra.mxu0 0.0
    %213 = vmatprep.subr.mxu0 0.0
    %214 = vmatpush1.msra.mxu0 0.0
    %215 = vmatprep.subr.mxu0 0.0
    %216 = vmatpush1.msra.mxu0 0.0
    %217 = vmatprep.subr.mxu0 0.0
    %218 = vmatpush1.msra.mxu0 0.0
    %219 = vmatprep.subr.mxu0 0.0
    %220 = vmatpush1.msra.mxu0 0.0
    %221 = vmatprep.subr.mxu0 0.0
    %222 = vmatpush1.msra.mxu0 0.0
    %223 = vmatprep.subr.mxu0 0.0
    %224 = vmatpush1.msra.mxu0 0.0
    %225 = vmatprep.subr.mxu0 0.0
    %226 = vmatpush1.msra.mxu0 0.0
    %227 = vmatprep.subr.mxu0 0.0
    %228 = vmatpush1.msra.mxu0 0.0
    %229 = vmatprep.subr.mxu0 0.0
    %230 = vmatpush1.msra.mxu0 0.0
    %231 = vmatprep.subr.mxu0 0.0
    %232 = vmatpush1.msra.mxu0 0.0
    %233 = vmatprep.subr.mxu0 0.0
    %234 = vmatpush1.msra.mxu0 0.0
    %235 = vmatprep.subr.mxu0 0.0
    %236 = vmatpush1.msra.mxu0 0.0
    %237 = vmatprep.subr.mxu0 0.0
    %238 = vmatpush1.msra.mxu0 0.0
    %239 = vmatprep.subr.mxu0 0.0
    %240 = vmatpush1.msra.mxu0 0.0
    %241 = vmatprep.subr.mxu0 0.0
    %242 = vmatpush1.msra.mxu0 0.0
    %243 = vmatprep.subr.mxu0 0.0
    %244 = vmatpush1.msra.mxu0 0.0
    %245 = vmatprep.mubr.f32.mxu0 0.0
    %246 = vmatmul.mubr.f32.gmra.mrb[0].mxu0 %v166
    %v247 = vpop.f32.mrb[0].mxu0
    %v248 = vadd.f32 0.0, %v247
    %v249 = vpop.f32.mrb[0].mxu0
    %v250 = vadd.f32 0.0, %v249
    %251 = vmatprep.mubr.f32.mxu0 0.0
    %252 = vmatmul.mubr.f32.gmra.mrb[0].mxu0 %v169
    %v253 = vpop.f32.mrb[0].mxu0
    %v254 = vadd.f32 0.0, %v253
    %v255 = vpop.f32.mrb[0].mxu0
    %v256 = vadd.f32 0.0, %v255
    %257 = vdwg.mxu0
    %258 = vmatprep.subr.mxu0 0.0
    %259 = vmatpush1.msra.mxu0 %v145
    %260 = vmatprep.subr.mxu0 0.0
    %261 = vmatpush1.msra.mxu0 %v148
    %262 = vmatprep.subr.mxu0 0.0
    %263 = vmatpush1.msra.mxu0 %v151
    %264 = vmatprep.subr.mxu0 0.0
    %265 = vmatpush1.msra.mxu0 %v154
    %266 = vmatprep.subr.mxu0 0.0
    %267 = vmatpush1.msra.mxu0 %v157
    %268 = vmatprep.subr.mxu0 0.0
    %269 = vmatpush1.msra.mxu0 %v160
    %270 = vmatprep.subr.mxu0 0.0
    %271 = vmatpush1.msra.mxu0 %v179
    %272 = vmatprep.subr.mxu0 0.0
    %273 = vmatpush1.msra.mxu0 0.0
    %274 = vmatprep.subr.mxu0 0.0
    %275 = vmatpush1.msra.mxu0 0.0
    %276 = vmatprep.subr.mxu0 0.0
    %277 = vmatpush1.msra.mxu0 0.0
    %278 = vmatprep.subr.mxu0 0.0
    %279 = vmatpush1.msra.mxu0 0.0
    %280 = vmatprep.subr.mxu0 0.0
    %281 = vmatpush1.msra.mxu0 0.0
    %282 = vmatprep.subr.mxu0 0.0
    %283 = vmatpush1.msra.mxu0 0.0
    %284 = vmatprep.subr.mxu0 0.0
    %285 = vmatpush1.msra.mxu0 0.0
    %286 = vmatprep.subr.mxu0 0.0
    %287 = vmatpush1.msra.mxu0 0.0
    %288 = vmatprep.subr.mxu0 0.0
    %289 = vmatpush1.msra.mxu0 0.0
    %290 = vmatprep.subr.mxu0 0.0
    %291 = vmatpush1.msra.mxu0 0.0
    %292 = vmatprep.subr.mxu0 0.0
    %293 = vmatpush1.msra.mxu0 0.0
    %294 = vmatprep.subr.mxu0 0.0
    %295 = vmatpush1.msra.mxu0 0.0
    %296 = vmatprep.subr.mxu0 0.0
    %297 = vmatpush1.msra.mxu0 0.0
    %298 = vmatprep.subr.mxu0 0.0
    %299 = vmatpush1.msra.mxu0 0.0
    %300 = vmatprep.subr.mxu0 0.0
    %301 = vmatpush1.msra.mxu0 0.0
    %302 = vmatprep.subr.mxu0 0.0
    %303 = vmatpush1.msra.mxu0 0.0
    %304 = vmatprep.subr.mxu0 0.0
    %305 = vmatpush1.msra.mxu0 0.0
    %306 = vmatprep.subr.mxu0 0.0
    %307 = vmatpush1.msra.mxu0 0.0
    %308 = vmatprep.subr.mxu0 0.0
    %309 = vmatpush1.msra.mxu0 0.0
    %310 = vmatprep.subr.mxu0 0.0
    %311 = vmatpush1.msra.mxu0 0.0
    %312 = vmatprep.subr.mxu0 0.0
    %313 = vmatpush1.msra.mxu0 0.0
    %314 = vmatprep.subr.mxu0 0.0
    %315 = vmatpush1.msra.mxu0 0.0
    %316 = vmatprep.subr.mxu0 0.0
    %317 = vmatpush1.msra.mxu0 0.0
    %318 = vmatprep.subr.mxu0 0.0
    %319 = vmatpush1.msra.mxu0 0.0
    %320 = vmatprep.subr.mxu0 0.0
    %321 = vmatpush1.msra.mxu0 0.0
    %322 = vmatprep.mubr.f32.mxu0 0.0
    %323 = vmatmul.mubr.f32.gmra.mrb[0].mxu0 %v166
    %v324 = vpop.f32.mrb[0].mxu0
    %v325 = vadd.f32 0.0, %v324
    %v326 = vpop.f32.mrb[0].mxu0
    %327 = vmatprep.mubr.f32.mxu0 0.0
    %328 = vmatmul.mubr.f32.gmra.mrb[0].mxu0 %v169
    %v329 = vpop.f32.mrb[0].mxu0
    %v330 = vadd.f32 0.0, %v329
    %v331 = vpop.f32.mrb[0].mxu0
    %332 = vdwg.mxu0
    %v333 = vld [vmem:[#allocation5] sm:$0xff]
    %v334 = vld [vmem:[#allocation5 + $0x8] sm:$0xff]
    %v335 = vld [vmem:[#allocation5 + $0x10] sm:$0xff]
    %v336 = vld [vmem:[#allocation5 + $0x18] sm:$0xff]
    %v337 = vld [vmem:[#allocation5 + $0x20] sm:$0xff]
    %v338 = vld [vmem:[#allocation5 + $0x28] sm:$0xff]
    %v339 = vld [vmem:[#allocation5 + $0x30] sm:$0xff]
    %v340 = vld [vmem:[#allocation5 + $0x38] sm:$0xff]
    %v341 = vld [vmem:[#allocation5 + $0x40] sm:$0xff]
    %v342 = vld [vmem:[#allocation5 + $0x48] sm:$0xff]
    %v343 = vld [vmem:[#allocation5 + $0x50] sm:$0xff]
    %v344 = vld [vmem:[#allocation5 + $0x58] sm:$0xff]
    %v345 = vld [vmem:[#allocation5 + $0x60] sm:$0xff]
    %v346 = vld [vmem:[#allocation5 + $0x68] sm:$0xff]
    %v347 = vld [vmem:[#allocation5 + $0x70] sm:$0xff]
    %v348 = vld [vmem:[#allocation5 + $0x78] sm:$0xff]
    %v349 = vld [vmem:[#allocation5 + $0x80] sm:$0xff]
    %v350 = vld [vmem:[#allocation5 + $0x88] sm:$0xff]
    %v351 = vld [vmem:[#allocation5 + $0x90] sm:$0xff]
    %v352 = vld [vmem:[#allocation5 + $0x98] sm:$0xff]
    %v353 = vld [vmem:[#allocation5 + $0xa0] sm:$0xff]
    %v354 = vld [vmem:[#allocation5 + $0xa8] sm:$0xff]
    %v355 = vld [vmem:[#allocation5 + $0xb0] sm:$0xff]
    %v356 = vld [vmem:[#allocation5 + $0xb8] sm:$0xff]
    %v357 = vld [vmem:[#allocation5 + $0xc0] sm:$0xff]
    %v358 = vld [vmem:[#allocation5 + $0xc8] sm:$0xff]
    %v359 = vld [vmem:[#allocation5 + $0xd0] sm:$0xff]
    %v360 = vld [vmem:[#allocation5 + $0xd8] sm:$0xff]
    %v361 = vld [vmem:[#allocation5 + $0xe0] sm:$0xff]
    %v362 = vld [vmem:[#allocation5 + $0xe8] sm:$0xff]
    %v363 = vld [vmem:[#allocation5 + $0xf0] sm:$0xff]
    %v364 = vld [vmem:[#allocation5 + $0xf8] sm:$0xff]
    %v365 = vld [vmem:[#allocation5 + $0x100] sm:$0xff]
    %v366 = vld [vmem:[#allocation5 + $0x108] sm:$0xff]
    %v367 = vld [vmem:[#allocation5 + $0x110] sm:$0xff]
    %v368 = vld [vmem:[#allocation5 + $0x118] sm:$0xff]
    %v369 = vld [vmem:[#allocation5 + $0x120] sm:$0xff]
    %v370 = vld [vmem:[#allocation5 + $0x128] sm:$0xff]
    %v371 = vld [vmem:[#allocation5 + $0x130] sm:$0xff]
    %v372 = vld [vmem:[#allocation5 + $0x138] sm:$0xff]
    %v373 = vld [vmem:[#allocation5 + $0x140] sm:$0xff]
    %v374 = vld [vmem:[#allocation5 + $0x148] sm:$0xff]
    %v375 = vld [vmem:[#allocation5 + $0x150] sm:$0xff]
    %v376 = vld [vmem:[#allocation5 + $0x158] sm:$0xff]
    %v377 = vld [vmem:[#allocation5 + $0x160] sm:$0xff]
    %v378 = vld [vmem:[#allocation5 + $0x168] sm:$0xff]
    %v379 = vld [vmem:[#allocation5 + $0x170] sm:$0xff]
    %v380 = vld [vmem:[#allocation5 + $0x178] sm:$0xff]
    %v381 = vld [vmem:[%s3] sm:$0x1]
    %382 = vmatprep.subr.mxu0 %v334
    %383 = vmatpush1.msra.mxu0 %v333
    %384 = vmatprep.subr.mxu0 %v337
    %385 = vmatpush1.msra.mxu0 %v336
    %386 = vmatprep.subr.mxu0 %v340
    %387 = vmatpush1.msra.mxu0 %v339
    %388 = vmatprep.subr.mxu0 %v343
    %389 = vmatpush1.msra.mxu0 %v342
    %390 = vmatprep.subr.mxu0 %v346
    %391 = vmatpush1.msra.mxu0 %v345
    %392 = vmatprep.subr.mxu0 %v349
    %393 = vmatpush1.msra.mxu0 %v348
    %394 = vmatprep.subr.mxu0 %v352
    %395 = vmatpush1.msra.mxu0 %v351
    %396 = vmatprep.subr.mxu0 %v355
    %397 = vmatpush1.msra.mxu0 %v354
    %398 = vmatprep.subr.mxu0 %v358
    %399 = vmatpush1.msra.mxu0 %v357
    %400 = vmatprep.subr.mxu0 %v361
    %401 = vmatpush1.msra.mxu0 %v360
    %402 = vmatprep.subr.mxu0 %v364
    %403 = vmatpush1.msra.mxu0 %v363
    %404 = vmatprep.subr.mxu0 %v367
    %405 = vmatpush1.msra.mxu0 %v366
    %406 = vmatprep.subr.mxu0 %v370
    %407 = vmatpush1.msra.mxu0 %v369
    %408 = vmatprep.subr.mxu0 %v373
    %409 = vmatpush1.msra.mxu0 %v372
    %410 = vmatprep.subr.mxu0 %v376
    %411 = vmatpush1.msra.mxu0 %v375
    %412 = vmatprep.subr.mxu0 %v379
    %413 = vmatpush1.msra.mxu0 %v378
    %414 = vmatprep.subr.mxu0 0.0
    %415 = vmatpush1.msra.mxu0 0.0
    %416 = vmatprep.subr.mxu0 0.0
    %417 = vmatpush1.msra.mxu0 0.0
    %418 = vmatprep.subr.mxu0 0.0
    %419 = vmatpush1.msra.mxu0 0.0
    %420 = vmatprep.subr.mxu0 0.0
    %421 = vmatpush1.msra.mxu0 0.0
    %422 = vmatprep.subr.mxu0 0.0
    %423 = vmatpush1.msra.mxu0 0.0
    %424 = vmatprep.subr.mxu0 0.0
    %425 = vmatpush1.msra.mxu0 0.0
    %426 = vmatprep.subr.mxu0 0.0
    %427 = vmatpush1.msra.mxu0 0.0
    %428 = vmatprep.subr.mxu0 0.0
    %429 = vmatpush1.msra.mxu0 0.0
    %430 = vmatprep.subr.mxu0 0.0
    %431 = vmatpush1.msra.mxu0 0.0
    %432 = vmatprep.subr.mxu0 0.0
    %433 = vmatpush1.msra.mxu0 0.0
    %434 = vmatprep.subr.mxu0 0.0
    %435 = vmatpush1.msra.mxu0 0.0
    %436 = vmatprep.subr.mxu0 0.0
    %437 = vmatpush1.msra.mxu0 0.0
    %438 = vmatprep.subr.mxu0 0.0
    %439 = vmatpush1.msra.mxu0 0.0
    %440 = vmatprep.subr.mxu0 0.0
    %441 = vmatpush1.msra.mxu0 0.0
    %442 = vmatprep.subr.mxu0 0.0
    %443 = vmatpush1.msra.mxu0 0.0
    %444 = vmatprep.subr.mxu0 0.0
    %445 = vmatpush1.msra.mxu0 0.0
    %446 = vmatprep.mubr.f32.mxu0 0.0
    %447 = vmatmul.mubr.f32.gmra.mrb[0].mxu0 0.0
    %v448 = vpop.f32.mrb[0].mxu0
    %v449 = vadd.f32 0.0, %v448
    %v450 = vpop.f32.mrb[0].mxu0
    %v451 = vadd.f32 0.0, %v450
    %452 = vdwg.mxu0
    %453 = vmatprep.subr.mxu0 0.0
    %454 = vmatpush1.msra.mxu0 %v335
    %455 = vmatprep.subr.mxu0 0.0
    %456 = vmatpush1.msra.mxu0 %v338
    %457 = vmatprep.subr.mxu0 0.0
    %458 = vmatpush1.msra.mxu0 %v341
    %459 = vmatprep.subr.mxu0 0.0
    %460 = vmatpush1.msra.mxu0 %v344
    %461 = vmatprep.subr.mxu0 0.0
    %462 = vmatpush1.msra.mxu0 %v347
    %463 = vmatprep.subr.mxu0 0.0
    %464 = vmatpush1.msra.mxu0 %v350
    %465 = vmatprep.subr.mxu0 0.0
    %466 = vmatpush1.msra.mxu0 %v353
    %467 = vmatprep.subr.mxu0 0.0
    %468 = vmatpush1.msra.mxu0 %v356
    %469 = vmatprep.subr.mxu0 0.0
    %470 = vmatpush1.msra.mxu0 %v359
    %471 = vmatprep.subr.mxu0 0.0
    %472 = vmatpush1.msra.mxu0 %v362
    %473 = vmatprep.subr.mxu0 0.0
    %474 = vmatpush1.msra.mxu0 %v365
    %475 = vmatprep.subr.mxu0 0.0
    %476 = vmatpush1.msra.mxu0 %v368
    %477 = vmatprep.subr.mxu0 0.0
    %478 = vmatpush1.msra.mxu0 %v371
    %479 = vmatprep.subr.mxu0 0.0
    %480 = vmatpush1.msra.mxu0 %v374
    %481 = vmatprep.subr.mxu0 0.0
    %482 = vmatpush1.msra.mxu0 %v377
    %483 = vmatprep.subr.mxu0 0.0
    %484 = vmatpush1.msra.mxu0 %v380
    %485 = vmatprep.subr.mxu0 0.0
    %486 = vmatpush1.msra.mxu0 0.0
    %487 = vmatprep.subr.mxu0 0.0
    %488 = vmatpush1.msra.mxu0 0.0
    %489 = vmatprep.subr.mxu0 0.0
    %490 = vmatpush1.msra.mxu0 0.0
    %491 = vmatprep.subr.mxu0 0.0
    %492 = vmatpush1.msra.mxu0 0.0
    %493 = vmatprep.subr.mxu0 0.0
    %494 = vmatpush1.msra.mxu0 0.0
    %495 = vmatprep.subr.mxu0 0.0
    %496 = vmatpush1.msra.mxu0 0.0
    %497 = vmatprep.subr.mxu0 0.0
    %498 = vmatpush1.msra.mxu0 0.0
    %499 = vmatprep.subr.mxu0 0.0
    %500 = vmatpush1.msra.mxu0 0.0
    %501 = vmatprep.subr.mxu0 0.0
    %502 = vmatpush1.msra.mxu0 0.0
    %503 = vmatprep.subr.mxu0 0.0
    %504 = vmatpush1.msra.mxu0 0.0
    %505 = vmatprep.subr.mxu0 0.0
    %506 = vmatpush1.msra.mxu0 0.0
    %507 = vmatprep.subr.mxu0 0.0
    %508 = vmatpush1.msra.mxu0 0.0
    %509 = vmatprep.subr.mxu0 0.0
    %510 = vmatpush1.msra.mxu0 0.0
    %511 = vmatprep.subr.mxu0 0.0
    %512 = vmatpush1.msra.mxu0 0.0
    %513 = vmatprep.subr.mxu0 0.0
    %514 = vmatpush1.msra.mxu0 0.0
    %515 = vmatprep.subr.mxu0 0.0
    %516 = vmatpush1.msra.mxu0 0.0
    %517 = vmatprep.mubr.f32.mxu0 0.0
    %518 = vmatmul.mubr.f32.gmra.mrb[0].mxu0 0.0
    %v519 = vpop.f32.mrb[0].mxu0
    %v520 = vadd.f32 0.0, %v519
    %v521 = vpop.f32.mrb[0].mxu0
    %522 = vdwg.mxu0
    %v523 = vadd.f32 %v248, %v449
    %v524 = vxor.u32 %v523, 2147483648
    %v525 = vmul.f32 %v524, 1.442695
    %v526 = vpow.pop %v525
    %v527 = vadd.f32 %v526, 1.0
    %v528 = vrcp.pop %v527
    %v529 = vmul.f32 1.0, %v528
    %v530 = vadd.f32 %v250, %v451
    %v531 = vxor.u32 %v530, 2147483648
    %v532 = vmul.f32 %v531, 1.442695
    %v533 = vpow.pop %v532
    %v534 = vadd.f32 %v533, 1.0
    %v535 = vrcp.pop %v534
    %v536 = vmul.f32 1.0, %v535
    %v538 = vlaneseq
    %v539 = vshrl.u32 %v538, 7
    %v540 = vsub.s32 0, %v539
    %v541 = vrot.slane %v381, %v540
    %v543 = vadd.f32 %v520, %v541
    %v544 = vmul.f32 %v529, %v543
    %v545 = vadd.f32 %v325, %v544
    %v546 = vtanh.pop %v545
    %v547 = vsub.f32 1.0, %v536
    %v548 = vmul.f32 %v547, %v546
    %v549 = vmul.f32 %v536, 0.0
    %v550 = vadd.f32 %v548, %v549
    %551 = vmatprep.subr.mxu0 %v334
    %552 = vmatpush1.msra.mxu0 %v333
    %553 = vmatprep.subr.mxu0 %v337
    %554 = vmatpush1.msra.mxu0 %v336
    %555 = vmatprep.subr.mxu0 %v340
    %556 = vmatpush1.msra.mxu0 %v339
    %557 = vmatprep.subr.mxu0 %v343
    %558 = vmatpush1.msra.mxu0 %v342
    %559 = vmatprep.subr.mxu0 %v346
    %560 = vmatpush1.msra.mxu0 %v345
    %561 = vmatprep.subr.mxu0 %v349
    %562 = vmatpush1.msra.mxu0 %v348
    %563 = vmatprep.subr.mxu0 %v352
    %564 = vmatpush1.msra.mxu0 %v351
    %565 = vmatprep.subr.mxu0 %v355
    %566 = vmatpush1.msra.mxu0 %v354
    %567 = vmatprep.subr.mxu0 %v358
    %568 = vmatpush1.msra.mxu0 %v357
    %569 = vmatprep.subr.mxu0 %v361
    %570 = vmatpush1.msra.mxu0 %v360
    %571 = vmatprep.subr.mxu0 %v364
    %572 = vmatpush1.msra.mxu0 %v363
    %573 = vmatprep.subr.mxu0 %v367
    %574 = vmatpush1.msra.mxu0 %v366
    %575 = vmatprep.subr.mxu0 %v370
    %576 = vmatpush1.msra.mxu0 %v369
    %577 = vmatprep.subr.mxu0 %v373
    %578 = vmatpush1.msra.mxu0 %v372
    %579 = vmatprep.subr.mxu0 %v376
    %580 = vmatpush1.msra.mxu0 %v375
    %581 = vmatprep.subr.mxu0 %v379
    %582 = vmatpush1.msra.mxu0 %v378
    %583 = vmatprep.subr.mxu0 0.0
    %584 = vmatpush1.msra.mxu0 0.0
    %585 = vmatprep.subr.mxu0 0.0
    %586 = vmatpush1.msra.mxu0 0.0
    %587 = vmatprep.subr.mxu0 0.0
    %588 = vmatpush1.msra.mxu0 0.0
    %589 = vmatprep.subr.mxu0 0.0
    %590 = vmatpush1.msra.mxu0 0.0
    %591 = vmatprep.subr.mxu0 0.0
    %592 = vmatpush1.msra.mxu0 0.0
    %593 = vmatprep.subr.mxu0 0.0
    %594 = vmatpush1.msra.mxu0 0.0
    %595 = vmatprep.subr.mxu0 0.0
    %596 = vmatpush1.msra.mxu0 0.0
    %597 = vmatprep.subr.mxu0 0.0
    %598 = vmatpush1.msra.mxu0 0.0
    %599 = vmatprep.subr.mxu0 0.0
    %600 = vmatpush1.msra.mxu0 0.0
    %601 = vmatprep.subr.mxu0 0.0
    %602 = vmatpush1.msra.mxu0 0.0
    %603 = vmatprep.subr.mxu0 0.0
    %604 = vmatpush1.msra.mxu0 0.0
    %605 = vmatprep.subr.mxu0 0.0
    %606 = vmatpush1.msra.mxu0 0.0
    %607 = vmatprep.subr.mxu0 0.0
    %608 = vmatpush1.msra.mxu0 0.0
    %609 = vmatprep.subr.mxu0 0.0
    %610 = vmatpush1.msra.mxu0 0.0
    %611 = vmatprep.subr.mxu0 0.0
    %612 = vmatpush1.msra.mxu0 0.0
    %613 = vmatprep.subr.mxu0 0.0
    %614 = vmatpush1.msra.mxu0 0.0
    %615 = vmatprep.mubr.f32.mxu0 0.0
    %616 = vmatmul.mubr.f32.gmra.mrb[0].mxu0 %v550
    %v617 = vpop.f32.mrb[0].mxu0
    %v618 = vadd.f32 0.0, %v617
    %v619 = vpop.f32.mrb[0].mxu0
    %v620 = vadd.f32 0.0, %v619
    %621 = vdwg.mxu0
    %622 = vmatprep.subr.mxu0 0.0
    %623 = vmatpush1.msra.mxu0 %v335
    %624 = vmatprep.subr.mxu0 0.0
    %625 = vmatpush1.msra.mxu0 %v338
    %626 = vmatprep.subr.mxu0 0.0
    %627 = vmatpush1.msra.mxu0 %v341
    %628 = vmatprep.subr.mxu0 0.0
    %629 = vmatpush1.msra.mxu0 %v344
    %630 = vmatprep.subr.mxu0 0.0
    %631 = vmatpush1.msra.mxu0 %v347
    %632 = vmatprep.subr.mxu0 0.0
    %633 = vmatpush1.msra.mxu0 %v350
    %634 = vmatprep.subr.mxu0 0.0
    %635 = vmatpush1.msra.mxu0 %v353
    %636 = vmatprep.subr.mxu0 0.0
    %637 = vmatpush1.msra.mxu0 %v356
    %638 = vmatprep.subr.mxu0 0.0
    %639 = vmatpush1.msra.mxu0 %v359
    %640 = vmatprep.subr.mxu0 0.0
    %641 = vmatpush1.msra.mxu0 %v362
    %642 = vmatprep.subr.mxu0 0.0
    %643 = vmatpush1.msra.mxu0 %v365
    %644 = vmatprep.subr.mxu0 0.0
    %645 = vmatpush1.msra.mxu0 %v368
    %646 = vmatprep.subr.mxu0 0.0
    %647 = vmatpush1.msra.mxu0 %v371
    %648 = vmatprep.subr.mxu0 0.0
    %649 = vmatpush1.msra.mxu0 %v374
    %650 = vmatprep.subr.mxu0 0.0
    %651 = vmatpush1.msra.mxu0 %v377
    %652 = vmatprep.subr.mxu0 0.0
    %653 = vmatpush1.msra.mxu0 %v380
    %654 = vmatprep.subr.mxu0 0.0
    %655 = vmatpush1.msra.mxu0 0.0
    %656 = vmatprep.subr.mxu0 0.0
    %657 = vmatpush1.msra.mxu0 0.0
    %658 = vmatprep.subr.mxu0 0.0
    %659 = vmatpush1.msra.mxu0 0.0
    %660 = vmatprep.subr.mxu0 0.0
    %661 = vmatpush1.msra.mxu0 0.0
    %662 = vmatprep.subr.mxu0 0.0
    %663 = vmatpush1.msra.mxu0 0.0
    %664 = vmatprep.subr.mxu0 0.0
    %665 = vmatpush1.msra.mxu0 0.0
    %666 = vmatprep.subr.mxu0 0.0
    %667 = vmatpush1.msra.mxu0 0.0
    %668 = vmatprep.subr.mxu0 0.0
    %669 = vmatpush1.msra.mxu0 0.0
    %670 = vmatprep.subr.mxu0 0.0
    %671 = vmatpush1.msra.mxu0 0.0
    %672 = vmatprep.subr.mxu0 0.0
    %673 = vmatpush1.msra.mxu0 0.0
    %674 = vmatprep.subr.mxu0 0.0
    %675 = vmatpush1.msra.mxu0 0.0
    %676 = vmatprep.subr.mxu0 0.0
    %677 = vmatpush1.msra.mxu0 0.0
    %678 = vmatprep.subr.mxu0 0.0
    %679 = vmatpush1.msra.mxu0 0.0
    %680 = vmatprep.subr.mxu0 0.0
    %681 = vmatpush1.msra.mxu0 0.0
    %682 = vmatprep.subr.mxu0 0.0
    %683 = vmatpush1.msra.mxu0 0.0
    %684 = vmatprep.subr.mxu0 0.0
    %685 = vmatpush1.msra.mxu0 0.0
    %686 = vmatprep.mubr.f32.mxu0 0.0
    %687 = vmatmul.mubr.f32.gmra.mrb[0].mxu0 %v550
    %v688 = vpop.f32.mrb[0].mxu0
    %v689 = vadd.f32 0.0, %v688
    %v690 = vpop.f32.mrb[0].mxu0
    %691 = vdwg.mxu0
    %v693 = vrot.slane %v618, 6
    %v695 = vadd.f32 %v248, %v693
    %v696 = vxor.u32 %v695, 2147483648
    %v697 = vmul.f32 %v696, 1.442695
    %v698 = vpow.pop %v697
    %v699 = vadd.f32 %v698, 1.0
    %v700 = vrcp.pop %v699
    %v701 = vmul.f32 1.0, %v700
    %v703 = vrot.slane %v620, 6
    %v705 = vadd.f32 %v250, %v703
    %v706 = vxor.u32 %v705, 2147483648
    %v707 = vmul.f32 %v706, 1.442695
    %v708 = vpow.pop %v707
    %v709 = vadd.f32 %v708, 1.0
    %v710 = vrcp.pop %v709
    %v711 = vmul.f32 1.0, %v710
    %v712 = vadd.f32 %v689, %v541
    %v714 = vrot.slane %v712, 6
    %v716 = vmul.f32 %v701, %v714
    %v717 = vadd.f32 %v325, %v716
    %v718 = vtanh.pop %v717
    %v719 = vsub.f32 1.0, %v711
    %v720 = vmul.f32 %v719, %v718
    %v722 = vrot.slane %v550, 6
    %v724 = vmul.f32 %v711, %v722
    %v725 = vadd.f32 %v720, %v724
    %v727 = vrot.slane %v725, 2
    %729 = vmatprep.subr.mxu0 %v334
    %730 = vmatpush1.msra.mxu0 %v333
    %731 = vmatprep.subr.mxu0 %v337
    %732 = vmatpush1.msra.mxu0 %v336
    %733 = vmatprep.subr.mxu0 %v340
    %734 = vmatpush1.msra.mxu0 %v339
    %735 = vmatprep.subr.mxu0 %v343
    %736 = vmatpush1.msra.mxu0 %v342
    %737 = vmatprep.subr.mxu0 %v346
    %738 = vmatpush1.msra.mxu0 %v345
    %739 = vmatprep.subr.mxu0 %v349
    %740 = vmatpush1.msra.mxu0 %v348
    %741 = vmatprep.subr.mxu0 %v352
    %742 = vmatpush1.msra.mxu0 %v351
    %743 = vmatprep.subr.mxu0 %v355
    %744 = vmatpush1.msra.mxu0 %v354
    %745 = vmatprep.subr.mxu0 %v358
    %746 = vmatpush1.msra.mxu0 %v357
    %747 = vmatprep.subr.mxu0 %v361
    %748 = vmatpush1.msra.mxu0 %v360
    %749 = vmatprep.subr.mxu0 %v364
    %750 = vmatpush1.msra.mxu0 %v363
    %751 = vmatprep.subr.mxu0 %v367
    %752 = vmatpush1.msra.mxu0 %v366
    %753 = vmatprep.subr.mxu0 %v370
    %754 = vmatpush1.msra.mxu0 %v369
    %755 = vmatprep.subr.mxu0 %v373
    %756 = vmatpush1.msra.mxu0 %v372
    %757 = vmatprep.subr.mxu0 %v376
    %758 = vmatpush1.msra.mxu0 %v375
    %759 = vmatprep.subr.mxu0 %v379
    %760 = vmatpush1.msra.mxu0 %v378
    %761 = vmatprep.subr.mxu0 0.0
    %762 = vmatpush1.msra.mxu0 0.0
    %763 = vmatprep.subr.mxu0 0.0
    %764 = vmatpush1.msra.mxu0 0.0
    %765 = vmatprep.subr.mxu0 0.0
    %766 = vmatpush1.msra.mxu0 0.0
    %767 = vmatprep.subr.mxu0 0.0
    %768 = vmatpush1.msra.mxu0 0.0
    %769 = vmatprep.subr.mxu0 0.0
    %770 = vmatpush1.msra.mxu0 0.0
    %771 = vmatprep.subr.mxu0 0.0
    %772 = vmatpush1.msra.mxu0 0.0
    %773 = vmatprep.subr.mxu0 0.0
    %774 = vmatpush1.msra.mxu0 0.0
    %775 = vmatprep.subr.mxu0 0.0
    %776 = vmatpush1.msra.mxu0 0.0
    %777 = vmatprep.subr.mxu0 0.0
    %778 = vmatpush1.msra.mxu0 0.0
    %779 = vmatprep.subr.mxu0 0.0
    %780 = vmatpush1.msra.mxu0 0.0
    %781 = vmatprep.subr.mxu0 0.0
    %782 = vmatpush1.msra.mxu0 0.0
    %783 = vmatprep.subr.mxu0 0.0
    %784 = vmatpush1.msra.mxu0 0.0
    %785 = vmatprep.subr.mxu0 0.0
    %786 = vmatpush1.msra.mxu0 0.0
    %787 = vmatprep.subr.mxu0 0.0
    %788 = vmatpush1.msra.mxu0 0.0
    %789 = vmatprep.subr.mxu0 0.0
    %790 = vmatpush1.msra.mxu0 0.0
    %791 = vmatprep.subr.mxu0 0.0
    %792 = vmatpush1.msra.mxu0 0.0
    %793 = vmatprep.mubr.f32.mxu0 0.0
    %794 = vmatmul.mubr.f32.gmra.mrb[0].mxu0 %v727
    %v795 = vpop.f32.mrb[0].mxu0
    %v796 = vadd.f32 0.0, %v795
    %v797 = vpop.f32.mrb[0].mxu0
    %v798 = vadd.f32 0.0, %v797
    %799 = vdwg.mxu0
    %800 = vmatprep.subr.mxu0 0.0
    %801 = vmatpush1.msra.mxu0 %v335
    %802 = vmatprep.subr.mxu0 0.0
    %803 = vmatpush1.msra.mxu0 %v338
    %804 = vmatprep.subr.mxu0 0.0
    %805 = vmatpush1.msra.mxu0 %v341
    %806 = vmatprep.subr.mxu0 0.0
    %807 = vmatpush1.msra.mxu0 %v344
    %808 = vmatprep.subr.mxu0 0.0
    %809 = vmatpush1.msra.mxu0 %v347
    %810 = vmatprep.subr.mxu0 0.0
    %811 = vmatpush1.msra.mxu0 %v350
    %812 = vmatprep.subr.mxu0 0.0
    %813 = vmatpush1.msra.mxu0 %v353
    %814 = vmatprep.subr.mxu0 0.0
    %815 = vmatpush1.msra.mxu0 %v356
    %816 = vmatprep.subr.mxu0 0.0
    %817 = vmatpush1.msra.mxu0 %v359
    %818 = vmatprep.subr.mxu0 0.0
    %819 = vmatpush1.msra.mxu0 %v362
    %820 = vmatprep.subr.mxu0 0.0
    %821 = vmatpush1.msra.mxu0 %v365
    %822 = vmatprep.subr.mxu0 0.0
    %823 = vmatpush1.msra.mxu0 %v368
    %824 = vmatprep.subr.mxu0 0.0
    %825 = vmatpush1.msra.mxu0 %v371
    %826 = vmatprep.subr.mxu0 0.0
    %827 = vmatpush1.msra.mxu0 %v374
    %828 = vmatprep.subr.mxu0 0.0
    %829 = vmatpush1.msra.mxu0 %v377
    %830 = vmatprep.subr.mxu0 0.0
    %831 = vmatpush1.msra.mxu0 %v380
    %832 = vmatprep.subr.mxu0 0.0
    %833 = vmatpush1.msra.mxu0 0.0
    %834 = vmatprep.subr.mxu0 0.0
    %835 = vmatpush1.msra.mxu0 0.0
    %836 = vmatprep.subr.mxu0 0.0
    %837 = vmatpush1.msra.mxu0 0.0
    %838 = vmatprep.subr.mxu0 0.0
    %839 = vmatpush1.msra.mxu0 0.0
    %840 = vmatprep.subr.mxu0 0.0
    %841 = vmatpush1.msra.mxu0 0.0
    %842 = vmatprep.subr.mxu0 0.0
    %843 = vmatpush1.msra.mxu0 0.0
    %844 = vmatprep.subr.mxu0 0.0
    %845 = vmatpush1.msra.mxu0 0.0
    %846 = vmatprep.subr.mxu0 0.0
    %847 = vmatpush1.msra.mxu0 0.0
    %848 = vmatprep.subr.mxu0 0.0
    %849 = vmatpush1.msra.mxu0 0.0
    %850 = vmatprep.subr.mxu0 0.0
    %851 = vmatpush1.msra.mxu0 0.0
    %852 = vmatprep.subr.mxu0 0.0
    %853 = vmatpush1.msra.mxu0 0.0
    %854 = vmatprep.subr.mxu0 0.0
    %855 = vmatpush1.msra.mxu0 0.0
    %856 = vmatprep.subr.mxu0 0.0
    %857 = vmatpush1.msra.mxu0 0.0
    %858 = vmatprep.subr.mxu0 0.0
    %859 = vmatpush1.msra.mxu0 0.0
    %860 = vmatprep.subr.mxu0 0.0
    %861 = vmatpush1.msra.mxu0 0.0
    %862 = vmatprep.subr.mxu0 0.0
    %863 = vmatpush1.msra.mxu0 0.0
    %864 = vmatprep.mubr.f32.mxu0 0.0
    %865 = vmatmul.mubr.f32.gmra.mrb[0].mxu0 %v727
    %v866 = vpop.f32.mrb[0].mxu0
    %v867 = vadd.f32 0.0, %v866
    %v868 = vpop.f32.mrb[0].mxu0
    %869 = vdwg.mxu0
    %v871 = vrot.slane %v796, 4
    %v873 = vadd.f32 %v248, %v871
    %v874 = vxor.u32 %v873, 2147483648
    %v875 = vmul.f32 %v874, 1.442695
    %v876 = vpow.pop %v875
    %v877 = vadd.f32 %v876, 1.0
    %v878 = vrcp.pop %v877
    %v879 = vmul.f32 1.0, %v878
    %v881 = vrot.slane %v798, 4
    %v883 = vadd.f32 %v250, %v881
    %v884 = vxor.u32 %v883, 2147483648
    %v885 = vmul.f32 %v884, 1.442695
    %v886 = vpow.pop %v885
    %v887 = vadd.f32 %v886, 1.0
    %v888 = vrcp.pop %v887
    %v889 = vmul.f32 1.0, %v888
    %v890 = vadd.f32 %v867, %v541
    %v892 = vrot.slane %v890, 4
    %v894 = vmul.f32 %v879, %v892
    %v895 = vadd.f32 %v325, %v894
    %v896 = vtanh.pop %v895
    %v897 = vsub.f32 1.0, %v889
    %v898 = vmul.f32 %v897, %v896
    %v899 = vrot.slane %v725, 6
    %v901 = vmul.f32 %v889, %v899
    %v902 = vadd.f32 %v898, %v901
    %v904 = vrot.slane %v902, 4
    %906 = vmatprep.subr.mxu0 %v334
    %907 = vmatpush1.msra.mxu0 %v333
    %908 = vmatprep.subr.mxu0 %v337
    %909 = vmatpush1.msra.mxu0 %v336
    %910 = vmatprep.subr.mxu0 %v340
    %911 = vmatpush1.msra.mxu0 %v339
    %912 = vmatprep.subr.mxu0 %v343
    %913 = vmatpush1.msra.mxu0 %v342
    %914 = vmatprep.subr.mxu0 %v346
    %915 = vmatpush1.msra.mxu0 %v345
    %916 = vmatprep.subr.mxu0 %v349
    %917 = vmatpush1.msra.mxu0 %v348
    %918 = vmatprep.subr.mxu0 %v352
    %919 = vmatpush1.msra.mxu0 %v351
    %920 = vmatprep.subr.mxu0 %v355
    %921 = vmatpush1.msra.mxu0 %v354
    %922 = vmatprep.subr.mxu0 %v358
    %923 = vmatpush1.msra.mxu0 %v357
    %924 = vmatprep.subr.mxu0 %v361
    %925 = vmatpush1.msra.mxu0 %v360
    %926 = vmatprep.subr.mxu0 %v364
    %927 = vmatpush1.msra.mxu0 %v363
    %928 = vmatprep.subr.mxu0 %v367
    %929 = vmatpush1.msra.mxu0 %v366
    %930 = vmatprep.subr.mxu0 %v370
    %931 = vmatpush1.msra.mxu0 %v369
    %932 = vmatprep.subr.mxu0 %v373
    %933 = vmatpush1.msra.mxu0 %v372
    %934 = vmatprep.subr.mxu0 %v376
    %935 = vmatpush1.msra.mxu0 %v375
    %936 = vmatprep.subr.mxu0 %v379
    %937 = vmatpush1.msra.mxu0 %v378
    %938 = vmatprep.subr.mxu0 0.0
    %939 = vmatpush1.msra.mxu0 0.0
    %940 = vmatprep.subr.mxu0 0.0
    %941 = vmatpush1.msra.mxu0 0.0
    %942 = vmatprep.subr.mxu0 0.0
    %943 = vmatpush1.msra.mxu0 0.0
    %944 = vmatprep.subr.mxu0 0.0
    %945 = vmatpush1.msra.mxu0 0.0
    %946 = vmatprep.subr.mxu0 0.0
    %947 = vmatpush1.msra.mxu0 0.0
    %948 = vmatprep.subr.mxu0 0.0
    %949 = vmatpush1.msra.mxu0 0.0
    %950 = vmatprep.subr.mxu0 0.0
    %951 = vmatpush1.msra.mxu0 0.0
    %952 = vmatprep.subr.mxu0 0.0
    %953 = vmatpush1.msra.mxu0 0.0
    %954 = vmatprep.subr.mxu0 0.0
    %955 = vmatpush1.msra.mxu0 0.0
    %956 = vmatprep.subr.mxu0 0.0
    %957 = vmatpush1.msra.mxu0 0.0
    %958 = vmatprep.subr.mxu0 0.0
    %959 = vmatpush1.msra.mxu0 0.0
    %960 = vmatprep.subr.mxu0 0.0
    %961 = vmatpush1.msra.mxu0 0.0
    %962 = vmatprep.subr.mxu0 0.0
    %963 = vmatpush1.msra.mxu0 0.0
    %964 = vmatprep.subr.mxu0 0.0
    %965 = vmatpush1.msra.mxu0 0.0
    %966 = vmatprep.subr.mxu0 0.0
    %967 = vmatpush1.msra.mxu0 0.0
    %968 = vmatprep.subr.mxu0 0.0
    %969 = vmatpush1.msra.mxu0 0.0
    %970 = vmatprep.mubr.f32.mxu0 0.0
    %971 = vmatmul.mubr.f32.gmra.mrb[0].mxu0 %v904
    %v972 = vpop.f32.mrb[0].mxu0
    %v973 = vadd.f32 0.0, %v972
    %v974 = vpop.f32.mrb[0].mxu0
    %v975 = vadd.f32 0.0, %v974
    %976 = vdwg.mxu0
    %977 = vmatprep.subr.mxu0 0.0
    %978 = vmatpush1.msra.mxu0 %v335
    %979 = vmatprep.subr.mxu0 0.0
    %980 = vmatpush1.msra.mxu0 %v338
    %981 = vmatprep.subr.mxu0 0.0
    %982 = vmatpush1.msra.mxu0 %v341
    %983 = vmatprep.subr.mxu0 0.0
    %984 = vmatpush1.msra.mxu0 %v344
    %985 = vmatprep.subr.mxu0 0.0
    %986 = vmatpush1.msra.mxu0 %v347
    %987 = vmatprep.subr.mxu0 0.0
    %988 = vmatpush1.msra.mxu0 %v350
    %989 = vmatprep.subr.mxu0 0.0
    %990 = vmatpush1.msra.mxu0 %v353
    %991 = vmatprep.subr.mxu0 0.0
    %992 = vmatpush1.msra.mxu0 %v356
    %993 = vmatprep.subr.mxu0 0.0
    %994 = vmatpush1.msra.mxu0 %v359
    %995 = vmatprep.subr.mxu0 0.0
    %996 = vmatpush1.msra.mxu0 %v362
    %997 = vmatprep.subr.mxu0 0.0
    %998 = vmatpush1.msra.mxu0 %v365
    %999 = vmatprep.subr.mxu0 0.0
    %1000 = vmatpush1.msra.mxu0 %v368
    %1001 = vmatprep.subr.mxu0 0.0
    %1002 = vmatpush1.msra.mxu0 %v371
    %1003 = vmatprep.subr.mxu0 0.0
    %1004 = vmatpush1.msra.mxu0 %v374
    %1005 = vmatprep.subr.mxu0 0.0
    %1006 = vmatpush1.msra.mxu0 %v377
    %1007 = vmatprep.subr.mxu0 0.0
    %1008 = vmatpush1.msra.mxu0 %v380
    %1009 = vmatprep.subr.mxu0 0.0
    %1010 = vmatpush1.msra.mxu0 0.0
    %1011 = vmatprep.subr.mxu0 0.0
    %1012 = vmatpush1.msra.mxu0 0.0
    %1013 = vmatprep.subr.mxu0 0.0
    %1014 = vmatpush1.msra.mxu0 0.0
    %1015 = vmatprep.subr.mxu0 0.0
    %1016 = vmatpush1.msra.mxu0 0.0
    %1017 = vmatprep.subr.mxu0 0.0
    %1018 = vmatpush1.msra.mxu0 0.0
    %1019 = vmatprep.subr.mxu0 0.0
    %1020 = vmatpush1.msra.mxu0 0.0
    %1021 = vmatprep.subr.mxu0 0.0
    %1022 = vmatpush1.msra.mxu0 0.0
    %1023 = vmatprep.subr.mxu0 0.0
    %1024 = vmatpush1.msra.mxu0 0.0
    %1025 = vmatprep.subr.mxu0 0.0
    %1026 = vmatpush1.msra.mxu0 0.0
    %1027 = vmatprep.subr.mxu0 0.0
    %1028 = vmatpush1.msra.mxu0 0.0
    %1029 = vmatprep.subr.mxu0 0.0
    %1030 = vmatpush1.msra.mxu0 0.0
    %1031 = vmatprep.subr.mxu0 0.0
    %1032 = vmatpush1.msra.mxu0 0.0
    %1033 = vmatprep.subr.mxu0 0.0
    %1034 = vmatpush1.msra.mxu0 0.0
    %1035 = vmatprep.subr.mxu0 0.0
    %1036 = vmatpush1.msra.mxu0 0.0
    %1037 = vmatprep.subr.mxu0 0.0
    %1038 = vmatpush1.msra.mxu0 0.0
    %1039 = vmatprep.subr.mxu0 0.0
    %1040 = vmatpush1.msra.mxu0 0.0
    %1041 = vmatprep.mubr.f32.mxu0 0.0
    %1042 = vmatmul.mubr.f32.gmra.mrb[0].mxu0 %v904
    %v1043 = vpop.f32.mrb[0].mxu0
    %v1044 = vadd.f32 0.0, %v1043
    %v1045 = vpop.f32.mrb[0].mxu0
    %1046 = vdwg.mxu0
    %v1048 = vrot.slane %v973, 2
    %v1050 = vadd.f32 %v248, %v1048
    %v1051 = vxor.u32 %v1050, 2147483648
    %v1052 = vmul.f32 %v1051, 1.442695
    %v1053 = vpow.pop %v1052
    %v1054 = vadd.f32 %v1053, 1.0
    %v1055 = vrcp.pop %v1054
    %v1056 = vmul.f32 1.0, %v1055
    %v1058 = vrot.slane %v975, 2
    %v1060 = vadd.f32 %v250, %v1058
    %v1061 = vxor.u32 %v1060, 2147483648
    %v1062 = vmul.f32 %v1061, 1.442695
    %v1063 = vpow.pop %v1062
    %v1064 = vadd.f32 %v1063, 1.0
    %v1065 = vrcp.pop %v1064
    %v1066 = vmul.f32 1.0, %v1065
    %v1067 = vadd.f32 %v1044, %v541
    %v1069 = vrot.slane %v1067, 2
    %v1071 = vmul.f32 %v1056, %v1069
    %v1072 = vadd.f32 %v325, %v1071
    %v1073 = vtanh.pop %v1072
    %v1074 = vsub.f32 1.0, %v1066
    %v1075 = vmul.f32 %v1074, %v1073
    %v1076 = vrot.slane %v902, 6
    %v1078 = vmul.f32 %v1066, %v1076
    %v1079 = vadd.f32 %v1075, %v1078
    %v1081 = vrot.slane %v1079, 6
    %1083 = vmatprep.subr.mxu0 %v334
    %1084 = vmatpush1.msra.mxu0 %v333
    %1085 = vmatprep.subr.mxu0 %v337
    %1086 = vmatpush1.msra.mxu0 %v336
    %1087 = vmatprep.subr.mxu0 %v340
    %1088 = vmatpush1.msra.mxu0 %v339
    %1089 = vmatprep.subr.mxu0 %v343
    %1090 = vmatpush1.msra.mxu0 %v342
    %1091 = vmatprep.subr.mxu0 %v346
    %1092 = vmatpush1.msra.mxu0 %v345
    %1093 = vmatprep.subr.mxu0 %v349
    %1094 = vmatpush1.msra.mxu0 %v348
    %1095 = vmatprep.subr.mxu0 %v352
    %1096 = vmatpush1.msra.mxu0 %v351
    %1097 = vmatprep.subr.mxu0 %v355
    %1098 = vmatpush1.msra.mxu0 %v354
    %1099 = vmatprep.subr.mxu0 %v358
    %1100 = vmatpush1.msra.mxu0 %v357
    %1101 = vmatprep.subr.mxu0 %v361
    %1102 = vmatpush1.msra.mxu0 %v360
    %1103 = vmatprep.subr.mxu0 %v364
    %1104 = vmatpush1.msra.mxu0 %v363
    %1105 = vmatprep.subr.mxu0 %v367
    %1106 = vmatpush1.msra.mxu0 %v366
    %1107 = vmatprep.subr.mxu0 %v370
    %1108 = vmatpush1.msra.mxu0 %v369
    %1109 = vmatprep.subr.mxu0 %v373
    %1110 = vmatpush1.msra.mxu0 %v372
    %1111 = vmatprep.subr.mxu0 %v376
    %1112 = vmatpush1.msra.mxu0 %v375
    %1113 = vmatprep.subr.mxu0 %v379
    %1114 = vmatpush1.msra.mxu0 %v378
    %1115 = vmatprep.subr.mxu0 0.0
    %1116 = vmatpush1.msra.mxu0 0.0
    %1117 = vmatprep.subr.mxu0 0.0
    %1118 = vmatpush1.msra.mxu0 0.0
    %1119 = vmatprep.subr.mxu0 0.0
    %1120 = vmatpush1.msra.mxu0 0.0
    %1121 = vmatprep.subr.mxu0 0.0
    %1122 = vmatpush1.msra.mxu0 0.0
    %1123 = vmatprep.subr.mxu0 0.0
    %1124 = vmatpush1.msra.mxu0 0.0
    %1125 = vmatprep.subr.mxu0 0.0
    %1126 = vmatpush1.msra.mxu0 0.0
    %1127 = vmatprep.subr.mxu0 0.0
    %1128 = vmatpush1.msra.mxu0 0.0
    %1129 = vmatprep.subr.mxu0 0.0
    %1130 = vmatpush1.msra.mxu0 0.0
    %1131 = vmatprep.subr.mxu0 0.0
    %1132 = vmatpush1.msra.mxu0 0.0
    %1133 = vmatprep.subr.mxu0 0.0
    %1134 = vmatpush1.msra.mxu0 0.0
    %1135 = vmatprep.subr.mxu0 0.0
    %1136 = vmatpush1.msra.mxu0 0.0
    %1137 = vmatprep.subr.mxu0 0.0
    %1138 = vmatpush1.msra.mxu0 0.0
    %1139 = vmatprep.subr.mxu0 0.0
    %1140 = vmatpush1.msra.mxu0 0.0
    %1141 = vmatprep.subr.mxu0 0.0
    %1142 = vmatpush1.msra.mxu0 0.0
    %1143 = vmatprep.subr.mxu0 0.0
    %1144 = vmatpush1.msra.mxu0 0.0
    %1145 = vmatprep.subr.mxu0 0.0
    %1146 = vmatpush1.msra.mxu0 0.0
    %1147 = vmatprep.mubr.f32.mxu0 0.0
    %1148 = vmatmul.mubr.f32.gmra.mrb[0].mxu0 %v1081
    %v1149 = vpop.f32.mrb[0].mxu0
    %v1150 = vadd.f32 0.0, %v1149
    %v1151 = vpop.f32.mrb[0].mxu0
    %v1152 = vadd.f32 0.0, %v1151
    %1153 = vdwg.mxu0
    %1154 = vmatprep.subr.mxu0 0.0
    %1155 = vmatpush1.msra.mxu0 %v335
    %1156 = vmatprep.subr.mxu0 0.0
    %1157 = vmatpush1.msra.mxu0 %v338
    %1158 = vmatprep.subr.mxu0 0.0
    %1159 = vmatpush1.msra.mxu0 %v341
    %1160 = vmatprep.subr.mxu0 0.0
    %1161 = vmatpush1.msra.mxu0 %v344
    %1162 = vmatprep.subr.mxu0 0.0
    %1163 = vmatpush1.msra.mxu0 %v347
    %1164 = vmatprep.subr.mxu0 0.0
    %1165 = vmatpush1.msra.mxu0 %v350
    %1166 = vmatprep.subr.mxu0 0.0
    %1167 = vmatpush1.msra.mxu0 %v353
    %1168 = vmatprep.subr.mxu0 0.0
    %1169 = vmatpush1.msra.mxu0 %v356
    %1170 = vmatprep.subr.mxu0 0.0
    %1171 = vmatpush1.msra.mxu0 %v359
    %1172 = vmatprep.subr.mxu0 0.0
    %1173 = vmatpush1.msra.mxu0 %v362
    %1174 = vmatprep.subr.mxu0 0.0
    %1175 = vmatpush1.msra.mxu0 %v365
    %1176 = vmatprep.subr.mxu0 0.0
    %1177 = vmatpush1.msra.mxu0 %v368
    %1178 = vmatprep.subr.mxu0 0.0
    %1179 = vmatpush1.msra.mxu0 %v371
    %1180 = vmatprep.subr.mxu0 0.0
    %1181 = vmatpush1.msra.mxu0 %v374
    %1182 = vmatprep.subr.mxu0 0.0
    %1183 = vmatpush1.msra.mxu0 %v377
    %1184 = vmatprep.subr.mxu0 0.0
    %1185 = vmatpush1.msra.mxu0 %v380
    %1186 = vmatprep.subr.mxu0 0.0
    %1187 = vmatpush1.msra.mxu0 0.0
    %1188 = vmatprep.subr.mxu0 0.0
    %1189 = vmatpush1.msra.mxu0 0.0
    %1190 = vmatprep.subr.mxu0 0.0
    %1191 = vmatpush1.msra.mxu0 0.0
    %1192 = vmatprep.subr.mxu0 0.0
    %1193 = vmatpush1.msra.mxu0 0.0
    %1194 = vmatprep.subr.mxu0 0.0
    %1195 = vmatpush1.msra.mxu0 0.0
    %1196 = vmatprep.subr.mxu0 0.0
    %1197 = vmatpush1.msra.mxu0 0.0
    %1198 = vmatprep.subr.mxu0 0.0
    %1199 = vmatpush1.msra.mxu0 0.0
    %1200 = vmatprep.subr.mxu0 0.0
    %1201 = vmatpush1.msra.mxu0 0.0
    %1202 = vmatprep.subr.mxu0 0.0
    %1203 = vmatpush1.msra.mxu0 0.0
    %1204 = vmatprep.subr.mxu0 0.0
    %1205 = vmatpush1.msra.mxu0 0.0
    %1206 = vmatprep.subr.mxu0 0.0
    %1207 = vmatpush1.msra.mxu0 0.0
    %1208 = vmatprep.subr.mxu0 0.0
    %1209 = vmatpush1.msra.mxu0 0.0
    %1210 = vmatprep.subr.mxu0 0.0
    %1211 = vmatpush1.msra.mxu0 0.0
    %1212 = vmatprep.subr.mxu0 0.0
    %1213 = vmatpush1.msra.mxu0 0.0
    %1214 = vmatprep.subr.mxu0 0.0
    %1215 = vmatpush1.msra.mxu0 0.0
    %1216 = vmatprep.subr.mxu0 0.0
    %1217 = vmatpush1.msra.mxu0 0.0
    %1218 = vmatprep.mubr.f32.mxu0 0.0
    %1219 = vmatmul.mubr.f32.gmra.mrb[0].mxu0 %v1081
    %v1220 = vpop.f32.mrb[0].mxu0
    %v1221 = vadd.f32 0.0, %v1220
    %v1222 = vpop.f32.mrb[0].mxu0
    %1223 = vdwg.mxu0
    %v1224 = vadd.f32 %v254, %v1150
    %v1225 = vxor.u32 %v1224, 2147483648
    %v1226 = vmul.f32 %v1225, 1.442695
    %v1227 = vpow.pop %v1226
    %v1228 = vadd.f32 %v1227, 1.0
    %v1229 = vrcp.pop %v1228
    %v1230 = vmul.f32 1.0, %v1229
    %v1231 = vadd.f32 %v256, %v1152
    %v1232 = vxor.u32 %v1231, 2147483648
    %v1233 = vmul.f32 %v1232, 1.442695
    %v1234 = vpow.pop %v1233
    %v1235 = vadd.f32 %v1234, 1.0
    %v1236 = vrcp.pop %v1235
    %v1237 = vmul.f32 1.0, %v1236
    %v1238 = vadd.f32 %v1221, %v541
    %v1239 = vmul.f32 %v1230, %v1238
    %v1240 = vadd.f32 %v330, %v1239
    %v1241 = vtanh.pop %v1240
    %v1242 = vsub.f32 1.0, %v1237
    %v1243 = vmul.f32 %v1242, %v1241
    %v1244 = vmul.f32 %v1237, %v1081
    %v1245 = vadd.f32 %v1243, %v1244
    %1246 = vmatprep.subr.mxu0 %v334
    %1247 = vmatpush1.msra.mxu0 %v333
    %1248 = vmatprep.subr.mxu0 %v337
    %1249 = vmatpush1.msra.mxu0 %v336
    %1250 = vmatprep.subr.mxu0 %v340
    %1251 = vmatpush1.msra.mxu0 %v339
    %1252 = vmatprep.subr.mxu0 %v343
    %1253 = vmatpush1.msra.mxu0 %v342
    %1254 = vmatprep.subr.mxu0 %v346
    %1255 = vmatpush1.msra.mxu0 %v345
    %1256 = vmatprep.subr.mxu0 %v349
    %1257 = vmatpush1.msra.mxu0 %v348
    %1258 = vmatprep.subr.mxu0 %v352
    %1259 = vmatpush1.msra.mxu0 %v351
    %1260 = vmatprep.subr.mxu0 %v355
    %1261 = vmatpush1.msra.mxu0 %v354
    %1262 = vmatprep.subr.mxu0 %v358
    %1263 = vmatpush1.msra.mxu0 %v357
    %1264 = vmatprep.subr.mxu0 %v361
    %1265 = vmatpush1.msra.mxu0 %v360
    %1266 = vmatprep.subr.mxu0 %v364
    %1267 = vmatpush1.msra.mxu0 %v363
    %1268 = vmatprep.subr.mxu0 %v367
    %1269 = vmatpush1.msra.mxu0 %v366
    %1270 = vmatprep.subr.mxu0 %v370
    %1271 = vmatpush1.msra.mxu0 %v369
    %1272 = vmatprep.subr.mxu0 %v373
    %1273 = vmatpush1.msra.mxu0 %v372
    %1274 = vmatprep.subr.mxu0 %v376
    %1275 = vmatpush1.msra.mxu0 %v375
    %1276 = vmatprep.subr.mxu0 %v379
    %1277 = vmatpush1.msra.mxu0 %v378
    %1278 = vmatprep.subr.mxu0 0.0
    %1279 = vmatpush1.msra.mxu0 0.0
    %1280 = vmatprep.subr.mxu0 0.0
    %1281 = vmatpush1.msra.mxu0 0.0
    %1282 = vmatprep.subr.mxu0 0.0
    %1283 = vmatpush1.msra.mxu0 0.0
    %1284 = vmatprep.subr.mxu0 0.0
    %1285 = vmatpush1.msra.mxu0 0.0
    %1286 = vmatprep.subr.mxu0 0.0
    %1287 = vmatpush1.msra.mxu0 0.0
    %1288 = vmatprep.subr.mxu0 0.0
    %1289 = vmatpush1.msra.mxu0 0.0
    %1290 = vmatprep.subr.mxu0 0.0
    %1291 = vmatpush1.msra.mxu0 0.0
    %1292 = vmatprep.subr.mxu0 0.0
    %1293 = vmatpush1.msra.mxu0 0.0
    %1294 = vmatprep.subr.mxu0 0.0
    %1295 = vmatpush1.msra.mxu0 0.0
    %1296 = vmatprep.subr.mxu0 0.0
    %1297 = vmatpush1.msra.mxu0 0.0
    %1298 = vmatprep.subr.mxu0 0.0
    %1299 = vmatpush1.msra.mxu0 0.0
    %1300 = vmatprep.subr.mxu0 0.0
    %1301 = vmatpush1.msra.mxu0 0.0
    %1302 = vmatprep.subr.mxu0 0.0
    %1303 = vmatpush1.msra.mxu0 0.0
    %1304 = vmatprep.subr.mxu0 0.0
    %1305 = vmatpush1.msra.mxu0 0.0
    %1306 = vmatprep.subr.mxu0 0.0
    %1307 = vmatpush1.msra.mxu0 0.0
    %1308 = vmatprep.subr.mxu0 0.0
    %1309 = vmatpush1.msra.mxu0 0.0
    %1310 = vmatprep.mubr.f32.mxu0 0.0
    %1311 = vmatmul.mubr.f32.gmra.mrb[0].mxu0 %v1245
    %v1312 = vpop.f32.mrb[0].mxu0
    %v1313 = vadd.f32 0.0, %v1312
    %v1314 = vpop.f32.mrb[0].mxu0
    %v1315 = vadd.f32 0.0, %v1314
    %1316 = vdwg.mxu0
    %1317 = vmatprep.subr.mxu0 0.0
    %1318 = vmatpush1.msra.mxu0 %v335
    %1319 = vmatprep.subr.mxu0 0.0
    %1320 = vmatpush1.msra.mxu0 %v338
    %1321 = vmatprep.subr.mxu0 0.0
    %1322 = vmatpush1.msra.mxu0 %v341
    %1323 = vmatprep.subr.mxu0 0.0
    %1324 = vmatpush1.msra.mxu0 %v344
    %1325 = vmatprep.subr.mxu0 0.0
    %1326 = vmatpush1.msra.mxu0 %v347
    %1327 = vmatprep.subr.mxu0 0.0
    %1328 = vmatpush1.msra.mxu0 %v350
    %1329 = vmatprep.subr.mxu0 0.0
    %1330 = vmatpush1.msra.mxu0 %v353
    %1331 = vmatprep.subr.mxu0 0.0
    %1332 = vmatpush1.msra.mxu0 %v356
    %1333 = vmatprep.subr.mxu0 0.0
    %1334 = vmatpush1.msra.mxu0 %v359
    %1335 = vmatprep.subr.mxu0 0.0
    %1336 = vmatpush1.msra.mxu0 %v362
    %1337 = vmatprep.subr.mxu0 0.0
    %1338 = vmatpush1.msra.mxu0 %v365
    %1339 = vmatprep.subr.mxu0 0.0
    %1340 = vmatpush1.msra.mxu0 %v368
    %1341 = vmatprep.subr.mxu0 0.0
    %1342 = vmatpush1.msra.mxu0 %v371
    %1343 = vmatprep.subr.mxu0 0.0
    %1344 = vmatpush1.msra.mxu0 %v374
    %1345 = vmatprep.subr.mxu0 0.0
    %1346 = vmatpush1.msra.mxu0 %v377
    %1347 = vmatprep.subr.mxu0 0.0
    %1348 = vmatpush1.msra.mxu0 %v380
    %1349 = vmatprep.subr.mxu0 0.0
    %1350 = vmatpush1.msra.mxu0 0.0
    %1351 = vmatprep.subr.mxu0 0.0
    %1352 = vmatpush1.msra.mxu0 0.0
    %1353 = vmatprep.subr.mxu0 0.0
    %1354 = vmatpush1.msra.mxu0 0.0
    %1355 = vmatprep.subr.mxu0 0.0
    %1356 = vmatpush1.msra.mxu0 0.0
    %1357 = vmatprep.subr.mxu0 0.0
    %1358 = vmatpush1.msra.mxu0 0.0
    %1359 = vmatprep.subr.mxu0 0.0
    %1360 = vmatpush1.msra.mxu0 0.0
    %1361 = vmatprep.subr.mxu0 0.0
    %1362 = vmatpush1.msra.mxu0 0.0
    %1363 = vmatprep.subr.mxu0 0.0
    %1364 = vmatpush1.msra.mxu0 0.0
    %1365 = vmatprep.subr.mxu0 0.0
    %1366 = vmatpush1.msra.mxu0 0.0
    %1367 = vmatprep.subr.mxu0 0.0
    %1368 = vmatpush1.msra.mxu0 0.0
    %1369 = vmatprep.subr.mxu0 0.0
    %1370 = vmatpush1.msra.mxu0 0.0
    %1371 = vmatprep.subr.mxu0 0.0
    %1372 = vmatpush1.msra.mxu0 0.0
    %1373 = vmatprep.subr.mxu0 0.0
    %1374 = vmatpush1.msra.mxu0 0.0
    %1375 = vmatprep.subr.mxu0 0.0
    %1376 = vmatpush1.msra.mxu0 0.0
    %1377 = vmatprep.subr.mxu0 0.0
    %1378 = vmatpush1.msra.mxu0 0.0
    %1379 = vmatprep.subr.mxu0 0.0
    %1380 = vmatpush1.msra.mxu0 0.0
    %1381 = vmatprep.mubr.f32.mxu0 0.0
    %1382 = vmatmul.mubr.f32.gmra.mrb[0].mxu0 %v1245
    %v1383 = vpop.f32.mrb[0].mxu0
    %v1384 = vadd.f32 0.0, %v1383
    %v1385 = vpop.f32.mrb[0].mxu0
    %1386 = vdwg.mxu0
    %v1388 = vrot.slane %v1313, 6
    %v1390 = vadd.f32 %v254, %v1388
    %v1391 = vxor.u32 %v1390, 2147483648
    %v1392 = vmul.f32 %v1391, 1.442695
    %v1393 = vpow.pop %v1392
    %v1394 = vadd.f32 %v1393, 1.0
    %v1395 = vrcp.pop %v1394
    %v1396 = vmul.f32 1.0, %v1395
    %v1398 = vrot.slane %v1315, 6
    %v1400 = vadd.f32 %v256, %v1398
    %v1401 = vxor.u32 %v1400, 2147483648
    %v1402 = vmul.f32 %v1401, 1.442695
    %v1403 = vpow.pop %v1402
    %v1404 = vadd.f32 %v1403, 1.0
    %v1405 = vrcp.pop %v1404
    %v1406 = vmul.f32 1.0, %v1405
    %v1407 = vadd.f32 %v1384, %v541
    %v1409 = vrot.slane %v1407, 6
    %v1411 = vmul.f32 %v1396, %v1409
    %v1412 = vadd.f32 %v330, %v1411
    %v1413 = vtanh.pop %v1412
    %v1414 = vsub.f32 1.0, %v1406
    %v1415 = vmul.f32 %v1414, %v1413
    %v1417 = vrot.slane %v1245, 6
    %v1419 = vmul.f32 %v1406, %v1417
    %v1420 = vadd.f32 %v1415, %v1419
    %v1422 = vrot.slane %v1420, 2
    %1424 = vmatprep.subr.mxu0 %v334
    %1425 = vmatpush1.msra.mxu0 %v333
    %1426 = vmatprep.subr.mxu0 %v337
    %1427 = vmatpush1.msra.mxu0 %v336
    %1428 = vmatprep.subr.mxu0 %v340
    %1429 = vmatpush1.msra.mxu0 %v339
    %1430 = vmatprep.subr.mxu0 %v343
    %1431 = vmatpush1.msra.mxu0 %v342
    %1432 = vmatprep.subr.mxu0 %v346
    %1433 = vmatpush1.msra.mxu0 %v345
    %1434 = vmatprep.subr.mxu0 %v349
    %1435 = vmatpush1.msra.mxu0 %v348
    %1436 = vmatprep.subr.mxu0 %v352
    %1437 = vmatpush1.msra.mxu0 %v351
    %1438 = vmatprep.subr.mxu0 %v355
    %1439 = vmatpush1.msra.mxu0 %v354
    %1440 = vmatprep.subr.mxu0 %v358
    %1441 = vmatpush1.msra.mxu0 %v357
    %1442 = vmatprep.subr.mxu0 %v361
    %1443 = vmatpush1.msra.mxu0 %v360
    %1444 = vmatprep.subr.mxu0 %v364
    %1445 = vmatpush1.msra.mxu0 %v363
    %1446 = vmatprep.subr.mxu0 %v367
    %1447 = vmatpush1.msra.mxu0 %v366
    %1448 = vmatprep.subr.mxu0 %v370
    %1449 = vmatpush1.msra.mxu0 %v369
    %1450 = vmatprep.subr.mxu0 %v373
    %1451 = vmatpush1.msra.mxu0 %v372
    %1452 = vmatprep.subr.mxu0 %v376
    %1453 = vmatpush1.msra.mxu0 %v375
    %1454 = vmatprep.subr.mxu0 %v379
    %1455 = vmatpush1.msra.mxu0 %v378
    %1456 = vmatprep.subr.mxu0 0.0
    %1457 = vmatpush1.msra.mxu0 0.0
    %1458 = vmatprep.subr.mxu0 0.0
    %1459 = vmatpush1.msra.mxu0 0.0
    %1460 = vmatprep.subr.mxu0 0.0
    %1461 = vmatpush1.msra.mxu0 0.0
    %1462 = vmatprep.subr.mxu0 0.0
    %1463 = vmatpush1.msra.mxu0 0.0
    %1464 = vmatprep.subr.mxu0 0.0
    %1465 = vmatpush1.msra.mxu0 0.0
    %1466 = vmatprep.subr.mxu0 0.0
    %1467 = vmatpush1.msra.mxu0 0.0
    %1468 = vmatprep.subr.mxu0 0.0
    %1469 = vmatpush1.msra.mxu0 0.0
    %1470 = vmatprep.subr.mxu0 0.0
    %1471 = vmatpush1.msra.mxu0 0.0
    %1472 = vmatprep.subr.mxu0 0.0
    %1473 = vmatpush1.msra.mxu0 0.0
    %1474 = vmatprep.subr.mxu0 0.0
    %1475 = vmatpush1.msra.mxu0 0.0
    %1476 = vmatprep.subr.mxu0 0.0
    %1477 = vmatpush1.msra.mxu0 0.0
    %1478 = vmatprep.subr.mxu0 0.0
    %1479 = vmatpush1.msra.mxu0 0.0
    %1480 = vmatprep.subr.mxu0 0.0
    %1481 = vmatpush1.msra.mxu0 0.0
    %1482 = vmatprep.subr.mxu0 0.0
    %1483 = vmatpush1.msra.mxu0 0.0
    %1484 = vmatprep.subr.mxu0 0.0
    %1485 = vmatpush1.msra.mxu0 0.0
    %1486 = vmatprep.subr.mxu0 0.0
    %1487 = vmatpush1.msra.mxu0 0.0
    %1488 = vmatprep.mubr.f32.mxu0 0.0
    %1489 = vmatmul.mubr.f32.gmra.mrb[0].mxu0 %v1422
    %v1490 = vpop.f32.mrb[0].mxu0
    %v1491 = vadd.f32 0.0, %v1490
    %v1492 = vpop.f32.mrb[0].mxu0
    %v1493 = vadd.f32 0.0, %v1492
    %1494 = vdwg.mxu0
    %1495 = vmatprep.subr.mxu0 0.0
    %1496 = vmatpush1.msra.mxu0 %v335
    %1497 = vmatprep.subr.mxu0 0.0
    %1498 = vmatpush1.msra.mxu0 %v338
    %1499 = vmatprep.subr.mxu0 0.0
    %1500 = vmatpush1.msra.mxu0 %v341
    %1501 = vmatprep.subr.mxu0 0.0
    %1502 = vmatpush1.msra.mxu0 %v344
    %1503 = vmatprep.subr.mxu0 0.0
    %1504 = vmatpush1.msra.mxu0 %v347
    %1505 = vmatprep.subr.mxu0 0.0
    %1506 = vmatpush1.msra.mxu0 %v350
    %1507 = vmatprep.subr.mxu0 0.0
    %1508 = vmatpush1.msra.mxu0 %v353
    %1509 = vmatprep.subr.mxu0 0.0
    %1510 = vmatpush1.msra.mxu0 %v356
    %1511 = vmatprep.subr.mxu0 0.0
    %1512 = vmatpush1.msra.mxu0 %v359
    %1513 = vmatprep.subr.mxu0 0.0
    %1514 = vmatpush1.msra.mxu0 %v362
    %1515 = vmatprep.subr.mxu0 0.0
    %1516 = vmatpush1.msra.mxu0 %v365
    %1517 = vmatprep.subr.mxu0 0.0
    %1518 = vmatpush1.msra.mxu0 %v368
    %1519 = vmatprep.subr.mxu0 0.0
    %1520 = vmatpush1.msra.mxu0 %v371
    %1521 = vmatprep.subr.mxu0 0.0
    %1522 = vmatpush1.msra.mxu0 %v374
    %1523 = vmatprep.subr.mxu0 0.0
    %1524 = vmatpush1.msra.mxu0 %v377
    %1525 = vmatprep.subr.mxu0 0.0
    %1526 = vmatpush1.msra.mxu0 %v380
    %1527 = vmatprep.subr.mxu0 0.0
    %1528 = vmatpush1.msra.mxu0 0.0
    %1529 = vmatprep.subr.mxu0 0.0
    %1530 = vmatpush1.msra.mxu0 0.0
    %1531 = vmatprep.subr.mxu0 0.0
    %1532 = vmatpush1.msra.mxu0 0.0
    %1533 = vmatprep.subr.mxu0 0.0
    %1534 = vmatpush1.msra.mxu0 0.0
    %1535 = vmatprep.subr.mxu0 0.0
    %1536 = vmatpush1.msra.mxu0 0.0
    %1537 = vmatprep.subr.mxu0 0.0
    %1538 = vmatpush1.msra.mxu0 0.0
    %1539 = vmatprep.subr.mxu0 0.0
    %1540 = vmatpush1.msra.mxu0 0.0
    %1541 = vmatprep.subr.mxu0 0.0
    %1542 = vmatpush1.msra.mxu0 0.0
    %1543 = vmatprep.subr.mxu0 0.0
    %1544 = vmatpush1.msra.mxu0 0.0
    %1545 = vmatprep.subr.mxu0 0.0
    %1546 = vmatpush1.msra.mxu0 0.0
    %1547 = vmatprep.subr.mxu0 0.0
    %1548 = vmatpush1.msra.mxu0 0.0
    %1549 = vmatprep.subr.mxu0 0.0
    %1550 = vmatpush1.msra.mxu0 0.0
    %1551 = vmatprep.subr.mxu0 0.0
    %1552 = vmatpush1.msra.mxu0 0.0
    %1553 = vmatprep.subr.mxu0 0.0
    %1554 = vmatpush1.msra.mxu0 0.0
    %1555 = vmatprep.subr.mxu0 0.0
    %1556 = vmatpush1.msra.mxu0 0.0
    %1557 = vmatprep.subr.mxu0 0.0
    %1558 = vmatpush1.msra.mxu0 0.0
    %1559 = vmatprep.mubr.f32.mxu0 0.0
    %1560 = vmatmul.mubr.f32.gmra.mrb[0].mxu0 %v1422
    %v1561 = vpop.f32.mrb[0].mxu0
    %v1562 = vadd.f32 0.0, %v1561
    %v1563 = vpop.f32.mrb[0].mxu0
    %1564 = vdwg.mxu0
    %v1566 = vrot.slane %v1491, 4
    %v1568 = vadd.f32 %v254, %v1566
    %v1569 = vxor.u32 %v1568, 2147483648
    %v1570 = vmul.f32 %v1569, 1.442695
    %v1571 = vpow.pop %v1570
    %v1572 = vadd.f32 %v1571, 1.0
    %v1573 = vrcp.pop %v1572
    %v1574 = vmul.f32 1.0, %v1573
    %v1576 = vrot.slane %v1493, 4
    %v1578 = vadd.f32 %v256, %v1576
    %v1579 = vxor.u32 %v1578, 2147483648
    %v1580 = vmul.f32 %v1579, 1.442695
    %v1581 = vpow.pop %v1580
    %v1582 = vadd.f32 %v1581, 1.0
    %v1583 = vrcp.pop %v1582
    %v1584 = vmul.f32 1.0, %v1583
    %v1585 = vadd.f32 %v1562, %v541
    %v1587 = vrot.slane %v1585, 4
    %v1589 = vmul.f32 %v1574, %v1587
    %v1590 = vadd.f32 %v330, %v1589
    %v1591 = vtanh.pop %v1590
    %v1592 = vsub.f32 1.0, %v1584
    %v1593 = vmul.f32 %v1592, %v1591
    %v1594 = vrot.slane %v1420, 6
    %v1596 = vmul.f32 %v1584, %v1594
    %v1597 = vadd.f32 %v1593, %v1596
    %v1599 = vrot.slane %v1597, 4
    %1601 = vmatprep.subr.mxu0 %v334
    %1602 = vmatpush1.msra.mxu0 %v333
    %1603 = vmatprep.subr.mxu0 %v337
    %1604 = vmatpush1.msra.mxu0 %v336
    %1605 = vmatprep.subr.mxu0 %v340
    %1606 = vmatpush1.msra.mxu0 %v339
    %1607 = vmatprep.subr.mxu0 %v343
    %1608 = vmatpush1.msra.mxu0 %v342
    %1609 = vmatprep.subr.mxu0 %v346
    %1610 = vmatpush1.msra.mxu0 %v345
    %1611 = vmatprep.subr.mxu0 %v349
    %1612 = vmatpush1.msra.mxu0 %v348
    %1613 = vmatprep.subr.mxu0 %v352
    %1614 = vmatpush1.msra.mxu0 %v351
    %1615 = vmatprep.subr.mxu0 %v355
    %1616 = vmatpush1.msra.mxu0 %v354
    %1617 = vmatprep.subr.mxu0 %v358
    %1618 = vmatpush1.msra.mxu0 %v357
    %1619 = vmatprep.subr.mxu0 %v361
    %1620 = vmatpush1.msra.mxu0 %v360
    %1621 = vmatprep.subr.mxu0 %v364
    %1622 = vmatpush1.msra.mxu0 %v363
    %1623 = vmatprep.subr.mxu0 %v367
    %1624 = vmatpush1.msra.mxu0 %v366
    %1625 = vmatprep.subr.mxu0 %v370
    %1626 = vmatpush1.msra.mxu0 %v369
    %1627 = vmatprep.subr.mxu0 %v373
    %1628 = vmatpush1.msra.mxu0 %v372
    %1629 = vmatprep.subr.mxu0 %v376
    %1630 = vmatpush1.msra.mxu0 %v375
    %1631 = vmatprep.subr.mxu0 %v379
    %1632 = vmatpush1.msra.mxu0 %v378
    %1633 = vmatprep.subr.mxu0 0.0
    %1634 = vmatpush1.msra.mxu0 0.0
    %1635 = vmatprep.subr.mxu0 0.0
    %1636 = vmatpush1.msra.mxu0 0.0
    %1637 = vmatprep.subr.mxu0 0.0
    %1638 = vmatpush1.msra.mxu0 0.0
    %1639 = vmatprep.subr.mxu0 0.0
    %1640 = vmatpush1.msra.mxu0 0.0
    %1641 = vmatprep.subr.mxu0 0.0
    %1642 = vmatpush1.msra.mxu0 0.0
    %1643 = vmatprep.subr.mxu0 0.0
    %1644 = vmatpush1.msra.mxu0 0.0
    %1645 = vmatprep.subr.mxu0 0.0
    %1646 = vmatpush1.msra.mxu0 0.0
    %1647 = vmatprep.subr.mxu0 0.0
    %1648 = vmatpush1.msra.mxu0 0.0
    %1649 = vmatprep.subr.mxu0 0.0
    %1650 = vmatpush1.msra.mxu0 0.0
    %1651 = vmatprep.subr.mxu0 0.0
    %1652 = vmatpush1.msra.mxu0 0.0
    %1653 = vmatprep.subr.mxu0 0.0
    %1654 = vmatpush1.msra.mxu0 0.0
    %1655 = vmatprep.subr.mxu0 0.0
    %1656 = vmatpush1.msra.mxu0 0.0
    %1657 = vmatprep.subr.mxu0 0.0
    %1658 = vmatpush1.msra.mxu0 0.0
    %1659 = vmatprep.subr.mxu0 0.0
    %1660 = vmatpush1.msra.mxu0 0.0
    %1661 = vmatprep.subr.mxu0 0.0
    %1662 = vmatpush1.msra.mxu0 0.0
    %1663 = vmatprep.subr.mxu0 0.0
    %1664 = vmatpush1.msra.mxu0 0.0
    %1665 = vmatprep.mubr.f32.mxu0 0.0
    %1666 = vmatmul.mubr.f32.gmra.mrb[0].mxu0 %v1599
    %v1667 = vpop.f32.mrb[0].mxu0
    %v1668 = vadd.f32 0.0, %v1667
    %v1669 = vpop.f32.mrb[0].mxu0
    %v1670 = vadd.f32 0.0, %v1669
    %1671 = vdwg.mxu0
    %1672 = vmatprep.subr.mxu0 0.0
    %1673 = vmatpush1.msra.mxu0 %v335
    %1674 = vmatprep.subr.mxu0 0.0
    %1675 = vmatpush1.msra.mxu0 %v338
    %1676 = vmatprep.subr.mxu0 0.0
    %1677 = vmatpush1.msra.mxu0 %v341
    %1678 = vmatprep.subr.mxu0 0.0
    %1679 = vmatpush1.msra.mxu0 %v344
    %1680 = vmatprep.subr.mxu0 0.0
    %1681 = vmatpush1.msra.mxu0 %v347
    %1682 = vmatprep.subr.mxu0 0.0
    %1683 = vmatpush1.msra.mxu0 %v350
    %1684 = vmatprep.subr.mxu0 0.0
    %1685 = vmatpush1.msra.mxu0 %v353
    %1686 = vmatprep.subr.mxu0 0.0
    %1687 = vmatpush1.msra.mxu0 %v356
    %1688 = vmatprep.subr.mxu0 0.0
    %1689 = vmatpush1.msra.mxu0 %v359
    %1690 = vmatprep.subr.mxu0 0.0
    %1691 = vmatpush1.msra.mxu0 %v362
    %1692 = vmatprep.subr.mxu0 0.0
    %1693 = vmatpush1.msra.mxu0 %v365
    %1694 = vmatprep.subr.mxu0 0.0
    %1695 = vmatpush1.msra.mxu0 %v368
    %1696 = vmatprep.subr.mxu0 0.0
    %1697 = vmatpush1.msra.mxu0 %v371
    %1698 = vmatprep.subr.mxu0 0.0
    %1699 = vmatpush1.msra.mxu0 %v374
    %1700 = vmatprep.subr.mxu0 0.0
    %1701 = vmatpush1.msra.mxu0 %v377
    %1702 = vmatprep.subr.mxu0 0.0
    %1703 = vmatpush1.msra.mxu0 %v380
    %1704 = vmatprep.subr.mxu0 0.0
    %1705 = vmatpush1.msra.mxu0 0.0
    %1706 = vmatprep.subr.mxu0 0.0
    %1707 = vmatpush1.msra.mxu0 0.0
    %1708 = vmatprep.subr.mxu0 0.0
    %1709 = vmatpush1.msra.mxu0 0.0
    %1710 = vmatprep.subr.mxu0 0.0
    %1711 = vmatpush1.msra.mxu0 0.0
    %1712 = vmatprep.subr.mxu0 0.0
    %1713 = vmatpush1.msra.mxu0 0.0
    %1714 = vmatprep.subr.mxu0 0.0
    %1715 = vmatpush1.msra.mxu0 0.0
    %1716 = vmatprep.subr.mxu0 0.0
    %1717 = vmatpush1.msra.mxu0 0.0
    %1718 = vmatprep.subr.mxu0 0.0
    %1719 = vmatpush1.msra.mxu0 0.0
    %1720 = vmatprep.subr.mxu0 0.0
    %1721 = vmatpush1.msra.mxu0 0.0
    %1722 = vmatprep.subr.mxu0 0.0
    %1723 = vmatpush1.msra.mxu0 0.0
    %1724 = vmatprep.subr.mxu0 0.0
    %1725 = vmatpush1.msra.mxu0 0.0
    %1726 = vmatprep.subr.mxu0 0.0
    %1727 = vmatpush1.msra.mxu0 0.0
    %1728 = vmatprep.subr.mxu0 0.0
    %1729 = vmatpush1.msra.mxu0 0.0
    %1730 = vmatprep.subr.mxu0 0.0
    %1731 = vmatpush1.msra.mxu0 0.0
    %1732 = vmatprep.subr.mxu0 0.0
    %1733 = vmatpush1.msra.mxu0 0.0
    %1734 = vmatprep.subr.mxu0 0.0
    %1735 = vmatpush1.msra.mxu0 0.0
    %1736 = vmatprep.mubr.f32.mxu0 0.0
    %1737 = vmatmul.mubr.f32.gmra.mrb[0].mxu0 %v1599
    %v1738 = vpop.f32.mrb[0].mxu0
    %v1739 = vadd.f32 0.0, %v1738
    %v1740 = vpop.f32.mrb[0].mxu0
    %1741 = vdwg.mxu0
    %v1743 = vrot.slane %v1668, 2
    %v1745 = vadd.f32 %v254, %v1743
    %v1746 = vxor.u32 %v1745, 2147483648
    %v1747 = vmul.f32 %v1746, 1.442695
    %v1748 = vpow.pop %v1747
    %v1749 = vadd.f32 %v1748, 1.0
    %v1750 = vrcp.pop %v1749
    %v1751 = vmul.f32 1.0, %v1750
    %v1753 = vrot.slane %v1670, 2
    %v1755 = vadd.f32 %v256, %v1753
    %v1756 = vxor.u32 %v1755, 2147483648
    %v1757 = vmul.f32 %v1756, 1.442695
    %v1758 = vpow.pop %v1757
    %v1759 = vadd.f32 %v1758, 1.0
    %v1760 = vrcp.pop %v1759
    %v1761 = vmul.f32 1.0, %v1760
    %v1762 = vadd.f32 %v1739, %v541
    %v1764 = vrot.slane %v1762, 2
    %v1766 = vmul.f32 %v1751, %v1764
    %v1767 = vadd.f32 %v330, %v1766
    %v1768 = vtanh.pop %v1767
    %v1769 = vsub.f32 1.0, %v1761
    %v1770 = vmul.f32 %v1769, %v1768
    %v1771 = vrot.slane %v1597, 6
    %v1773 = vmul.f32 %v1761, %v1771
    %v1774 = vadd.f32 %v1770, %v1773
    %v1775 = vld [vmem:[%s4] sm:$0xff]
    %v1776 = vld [vmem:[%s4 + $0x8] sm:$0xff]
    %v1777 = vld [vmem:[#allocation7] sm:$0xff]
    %v1778 = vld [vmem:[#allocation7 + $0x8] sm:$0xff]
    %v1779 = vld [vmem:[#allocation7 + $0x10] sm:$0xff]
    %v1780 = vld [vmem:[#allocation7 + $0x18] sm:$0xff]
    %v1781 = vld [vmem:[#allocation7 + $0x20] sm:$0xff]
    %v1782 = vld [vmem:[#allocation7 + $0x28] sm:$0xff]
    %v1783 = vld [vmem:[#allocation7 + $0x30] sm:$0xff]
    %v1784 = vld [vmem:[#allocation7 + $0x38] sm:$0xff]
    %vm1785 = vcmask 523264
    %v1787 = vsel %vm1785, %v1775, 0
    %v1790 = vsel %vm1785, %v1776, 0
    %1792 = vmatprep.subr.mxu0 0.0
    %1793 = vmatpush1.msra.mxu0 %v1777
    %1794 = vmatprep.subr.mxu0 0.0
    %1795 = vmatpush1.msra.mxu0 %v1778
    %1796 = vmatprep.subr.mxu0 0.0
    %1797 = vmatpush1.msra.mxu0 %v1779
    %1798 = vmatprep.subr.mxu0 0.0
    %1799 = vmatpush1.msra.mxu0 %v1780
    %1800 = vmatprep.subr.mxu0 0.0
    %1801 = vmatpush1.msra.mxu0 %v1781
    %1802 = vmatprep.subr.mxu0 0.0
    %1803 = vmatpush1.msra.mxu0 %v1782
    %1804 = vmatprep.subr.mxu0 0.0
    %1805 = vmatpush1.msra.mxu0 %v1783
    %1806 = vmatprep.subr.mxu0 0.0
    %1807 = vmatpush1.msra.mxu0 %v1784
    %1808 = vmatprep.subr.mxu0 0.0
    %1809 = vmatpush1.msra.mxu0 0.0
    %1810 = vmatprep.subr.mxu0 0.0
    %1811 = vmatpush1.msra.mxu0 0.0
    %1812 = vmatprep.subr.mxu0 0.0
    %1813 = vmatpush1.msra.mxu0 0.0
    %1814 = vmatprep.subr.mxu0 0.0
    %1815 = vmatpush1.msra.mxu0 0.0
    %1816 = vmatprep.subr.mxu0 0.0
    %1817 = vmatpush1.msra.mxu0 0.0
    %1818 = vmatprep.subr.mxu0 0.0
    %1819 = vmatpush1.msra.mxu0 0.0
    %1820 = vmatprep.subr.mxu0 0.0
    %1821 = vmatpush1.msra.mxu0 0.0
    %1822 = vmatprep.subr.mxu0 0.0
    %1823 = vmatpush1.msra.mxu0 0.0
    %1824 = vmatprep.subr.mxu0 0.0
    %1825 = vmatpush1.msra.mxu0 0.0
    %1826 = vmatprep.subr.mxu0 0.0
    %1827 = vmatpush1.msra.mxu0 0.0
    %1828 = vmatprep.subr.mxu0 0.0
    %1829 = vmatpush1.msra.mxu0 0.0
    %1830 = vmatprep.subr.mxu0 0.0
    %1831 = vmatpush1.msra.mxu0 0.0
    %1832 = vmatprep.subr.mxu0 0.0
    %1833 = vmatpush1.msra.mxu0 0.0
    %1834 = vmatprep.subr.mxu0 0.0
    %1835 = vmatpush1.msra.mxu0 0.0
    %1836 = vmatprep.subr.mxu0 0.0
    %1837 = vmatpush1.msra.mxu0 0.0
    %1838 = vmatprep.subr.mxu0 0.0
    %1839 = vmatpush1.msra.mxu0 0.0
    %1840 = vmatprep.subr.mxu0 0.0
    %1841 = vmatpush1.msra.mxu0 0.0
    %1842 = vmatprep.subr.mxu0 0.0
    %1843 = vmatpush1.msra.mxu0 0.0
    %1844 = vmatprep.subr.mxu0 0.0
    %1845 = vmatpush1.msra.mxu0 0.0
    %1846 = vmatprep.subr.mxu0 0.0
    %1847 = vmatpush1.msra.mxu0 0.0
    %1848 = vmatprep.subr.mxu0 0.0
    %1849 = vmatpush1.msra.mxu0 0.0
    %1850 = vmatprep.subr.mxu0 0.0
    %1851 = vmatpush1.msra.mxu0 0.0
    %1852 = vmatprep.subr.mxu0 0.0
    %1853 = vmatpush1.msra.mxu0 0.0
    %1854 = vmatprep.subr.mxu0 0.0
    %1855 = vmatpush1.msra.mxu0 0.0
    %1856 = vmatprep.mubr.f32.mxu0 0.0
    %1857 = vmatmul.mubr.f32.gmra.mrb[0].mxu0 %v1787
    %v1858 = vpop.f32.mrb[0].mxu0
    %v1859 = vadd.f32 0.0, %v1858
    %v1860 = vpop.f32.mrb[0].mxu0
    %1861 = vmatprep.mubr.f32.mxu0 0.0
    %1862 = vmatmul.mubr.f32.gmra.mrb[0].mxu0 %v1790
    %v1863 = vpop.f32.mrb[0].mxu0
    %v1864 = vadd.f32 0.0, %v1863
    %v1865 = vpop.f32.mrb[0].mxu0
    %1866 = vdwg.mxu0
    %v1867 = vld [vmem:[#allocation8] sm:$0xff]
    %v1868 = vld [vmem:[#allocation8 + $0x8] sm:$0xff]
    %v1869 = vld [vmem:[#allocation8 + $0x10] sm:$0xff]
    %v1870 = vld [vmem:[#allocation8 + $0x18] sm:$0xff]
    %v1871 = vld [vmem:[#allocation8 + $0x20] sm:$0xff]
    %v1872 = vld [vmem:[#allocation8 + $0x28] sm:$0xff]
    %v1873 = vld [vmem:[#allocation8 + $0x30] sm:$0xff]
    %v1874 = vld [vmem:[#allocation8 + $0x38] sm:$0xff]
    %v1875 = vld [vmem:[#allocation8 + $0x40] sm:$0xff]
    %v1876 = vld [vmem:[#allocation8 + $0x48] sm:$0xff]
    %v1877 = vld [vmem:[#allocation8 + $0x50] sm:$0xff]
    %v1878 = vld [vmem:[#allocation8 + $0x58] sm:$0xff]
    %v1879 = vld [vmem:[#allocation8 + $0x60] sm:$0xff]
    %v1880 = vld [vmem:[#allocation8 + $0x68] sm:$0xff]
    %v1881 = vld [vmem:[#allocation8 + $0x70] sm:$0xff]
    %v1882 = vld [vmem:[#allocation8 + $0x78] sm:$0xff]
    %v1884 = vrot.slane %v1774, 6
    %1886 = vmatprep.subr.mxu0 0.0
    %1887 = vmatpush1.msra.mxu0 %v1867
    %1888 = vmatprep.subr.mxu0 0.0
    %1889 = vmatpush1.msra.mxu0 %v1868
    %1890 = vmatprep.subr.mxu0 0.0
    %1891 = vmatpush1.msra.mxu0 %v1869
    %1892 = vmatprep.subr.mxu0 0.0
    %1893 = vmatpush1.msra.mxu0 %v1870
    %1894 = vmatprep.subr.mxu0 0.0
    %1895 = vmatpush1.msra.mxu0 %v1871
    %1896 = vmatprep.subr.mxu0 0.0
    %1897 = vmatpush1.msra.mxu0 %v1872
    %1898 = vmatprep.subr.mxu0 0.0
    %1899 = vmatpush1.msra.mxu0 %v1873
    %1900 = vmatprep.subr.mxu0 0.0
    %1901 = vmatpush1.msra.mxu0 %v1874
    %1902 = vmatprep.subr.mxu0 0.0
    %1903 = vmatpush1.msra.mxu0 %v1875
    %1904 = vmatprep.subr.mxu0 0.0
    %1905 = vmatpush1.msra.mxu0 %v1876
    %1906 = vmatprep.subr.mxu0 0.0
    %1907 = vmatpush1.msra.mxu0 %v1877
    %1908 = vmatprep.subr.mxu0 0.0
    %1909 = vmatpush1.msra.mxu0 %v1878
    %1910 = vmatprep.subr.mxu0 0.0
    %1911 = vmatpush1.msra.mxu0 %v1879
    %1912 = vmatprep.subr.mxu0 0.0
    %1913 = vmatpush1.msra.mxu0 %v1880
    %1914 = vmatprep.subr.mxu0 0.0
    %1915 = vmatpush1.msra.mxu0 %v1881
    %1916 = vmatprep.subr.mxu0 0.0
    %1917 = vmatpush1.msra.mxu0 %v1882
    %1918 = vmatprep.subr.mxu0 0.0
    %1919 = vmatpush1.msra.mxu0 0.0
    %1920 = vmatprep.subr.mxu0 0.0
    %1921 = vmatpush1.msra.mxu0 0.0
    %1922 = vmatprep.subr.mxu0 0.0
    %1923 = vmatpush1.msra.mxu0 0.0
    %1924 = vmatprep.subr.mxu0 0.0
    %1925 = vmatpush1.msra.mxu0 0.0
    %1926 = vmatprep.subr.mxu0 0.0
    %1927 = vmatpush1.msra.mxu0 0.0
    %1928 = vmatprep.subr.mxu0 0.0
    %1929 = vmatpush1.msra.mxu0 0.0
    %1930 = vmatprep.subr.mxu0 0.0
    %1931 = vmatpush1.msra.mxu0 0.0
    %1932 = vmatprep.subr.mxu0 0.0
    %1933 = vmatpush1.msra.mxu0 0.0
    %1934 = vmatprep.subr.mxu0 0.0
    %1935 = vmatpush1.msra.mxu0 0.0
    %1936 = vmatprep.subr.mxu0 0.0
    %1937 = vmatpush1.msra.mxu0 0.0
    %1938 = vmatprep.subr.mxu0 0.0
    %1939 = vmatpush1.msra.mxu0 0.0
    %1940 = vmatprep.subr.mxu0 0.0
    %1941 = vmatpush1.msra.mxu0 0.0
    %1942 = vmatprep.subr.mxu0 0.0
    %1943 = vmatpush1.msra.mxu0 0.0
    %1944 = vmatprep.subr.mxu0 0.0
    %1945 = vmatpush1.msra.mxu0 0.0
    %1946 = vmatprep.subr.mxu0 0.0
    %1947 = vmatpush1.msra.mxu0 0.0
    %1948 = vmatprep.subr.mxu0 0.0
    %1949 = vmatpush1.msra.mxu0 0.0
    %1950 = vmatprep.mubr.f32.mxu0 0.0
    %1951 = vmatmul.mubr.f32.gmra.mrb[0].mxu0 %v1884
    %v1952 = vpop.f32.mrb[0].mxu0
    %v1953 = vadd.f32 0.0, %v1952
    %v1954 = vpop.f32.mrb[0].mxu0
    %1955 = vdwg.mxu0
    %v1958 = vunpack.c.l.s4 1966171168
    %v1959 = vunpack.c.0.s8 %v1958
    %v1960 = vlaneseq
    %v1961 = vshrl.u32 %v1960, 7
    %v1962 = vsub.s32 %v1959, %v1961
    %v1963 = vrot.slane %v1953, %v1962
    %v1964 = vcombine.high %v1963, %v1963
    %v1966 = vunpack.c.l.s4 1966171168
    %v1967 = vunpack.c.0.s8 %v1966
    %v1968 = vlaneseq
    %v1969 = vshrl.u32 %v1968, 7
    %v1970 = vsub.s32 %v1967, %v1969
    %v1971 = vrot.slane %v1963, %v1970
    %v1973 = vunpack.c.l.s4 1966171168
    %v1974 = vunpack.c.0.s8 %v1973
    %v1975 = vlaneseq
    %v1976 = vshrl.u32 %v1975, 7
    %v1977 = vsub.s32 %v1974, %v1976
    %v1978 = vrot.slane %v1964, %v1977
    %v1979 = vlaneseq
    %v1980 = vshrl.u32 %v1979, 7
    %v1981 = vsub.s32 0, %v1980
    %v1982 = vrot.slane %v1971, %v1981
    %v1983 = vlaneseq
    %v1984 = vshrl.u32 %v1983, 7
    %v1985 = vsub.s32 0, %v1984
    %v1986 = vrot.slane %v1978, %v1985
    %v1989 = vadd.f32 %v1859, %v1982
    %v1990 = vadd.f32 %v1864, %v1986
    %v1991 = vld [vmem:[%s7] sm:$0x1]
    %v1993 = vlaneseq
    %v1994 = vshrl.u32 %v1993, 7
    %v1995 = vsub.s32 0, %v1994
    %v1996 = vrot.slane %v1991, %v1995
    %v1998 = vadd.f32 %v1989, %v1996
    %v1999 = vadd.f32 %v1990, %v1996
    %v2000 = vmax.f32 %v1998, 0.0
    %v2001 = vmax.f32 %v1999, 0.0
    %v2002 = vld [vmem:[%s8] sm:$0x1]
    %v2004 = vlaneseq
    %v2005 = vshrl.u32 %v2004, 7
    %v2006 = vsub.s32 0, %v2005
    %v2007 = vrot.slane %v2002, %v2006
    %v2009 = vmul.f32 %v2000, %v2007
    %v2010 = vmul.f32 %v2001, %v2007
    %2011 = vadd.xlane.f32.xlu0 %v2009
    %v2012 = vpop.xlane.xlu0 %2011
    %2013 = vadd.xlane.f32.xlu0 %v2010
    %v2014 = vpop.xlane.xlu0 %2013
    %v2017 = vlaneseq
    %v2018 = vshrl.u32 %v2017, 7
    %v2019 = vsub.s32 %v130, %v2018
    %v2020 = vrot.slane %v2012, %v2019
    %v2021 = vlaneseq
    %v2022 = vshrl.u32 %v2021, 7
    %v2023 = vsub.s32 %v130, %v2022
    %v2024 = vrot.slane %v2014, %v2023
    %vm2025 = vcmask 1041409
    %v2026 = vsel %vm2025, %v2024, %v2020
    %vm2028 = vcmask 58368
    %v2029 = vsel %vm2028, %v2026, -inf
    %2030 = vmax.xlane.f32.xlu0 %v2029
    %v2031 = vpop.xlane.xlu0 %2030
    %v2033 = vlaneseq
    %v2034 = vshrl.u32 %v2033, 7
    %v2035 = vsub.s32 0, %v2034
    %v2036 = vrot.slane %v2031, %v2035
    %v2037 = vlaneseq
    %v2038 = vshrl.u32 %v2037, 7
    %v2039 = vsub.s32 1, %v2038
    %v2040 = vrot.slane %v2031, %v2039
    %v2043 = vsub.f32 %v2012, %v2036
    %v2044 = vsub.f32 %v2014, %v2040
    %v2045 = vmul.f32 %v2043, 1.442695
    %v2046 = vpow.pop %v2045
    %v2047 = vmul.f32 %v2044, 1.442695
    %v2048 = vpow.pop %v2047
    %2051 = vset.pattern.permute.xlu0 0
    %2052 = vperm.xlu0 %2051, %v2046
    %v2053 = vpop.permute.xlu0 %2052
    %2054 = vset.pattern.permute.xlu0 0
    %2055 = vperm.xlu0 %2054, %v2048
    %v2056 = vpop.permute.xlu0 %2055
    %v2057 = vlaneseq
    %v2058 = vshrl.u32 %v2057, 7
    %v2059 = vsub.s32 %v130, %v2058
    %v2060 = vrot.slane %v2053, %v2059
    %v2061 = vlaneseq
    %v2062 = vshrl.u32 %v2061, 7
    %v2063 = vsub.s32 %v130, %v2062
    %v2064 = vrot.slane %v2056, %v2063
    %v2065 = vsel %vm2025, %v2064, %v2060
    %v2067 = vsel %vm2028, %v2065, 0.0
    %2068 = vadd.xlane.f32.xlu0 %v2067
    %v2069 = vpop.xlane.xlu0 %2068
    %v2070 = vrcp.pop %v2069
    %v2071 = vmul.f32 %v2069, %v2070
    %v2072 = vsub.f32 2.0, %v2071
    %v2073 = vmul.f32 %v2070, %v2072
    %v2075 = vlaneseq
    %v2076 = vshrl.u32 %v2075, 7
    %v2077 = vsub.s32 0, %v2076
    %v2078 = vrot.slane %v2073, %v2077
    %v2079 = vlaneseq
    %v2080 = vshrl.u32 %v2079, 7
    %v2081 = vsub.s32 1, %v2080
    %v2082 = vrot.slane %v2073, %v2081
    %v2085 = vmul.f32 %v2046, %v2078
    %v2086 = vmul.f32 %v2048, %v2082
    %2088 = vset.pattern.permute.xlu0 0
    %2089 = vperm.xlu0 %2088, %v2085
    %v2090 = vpop.permute.xlu0 %2089
    %v2091 = vlaneseq
    %v2092 = vshrl.u32 %v2091, 7
    %v2093 = vsub.s32 %v130, %v2092
    %v2094 = vrot.slane %v2090, %v2093
    %vm2095 = vcmask 64512
    %v2096 = vsel %vm2095, %v2094, 0
    %2098 = vmatprep.subr.mxu0 0.0
    %2099 = vmatpush1.msra.mxu0 %v1775
    %2100 = vmatprep.subr.mxu0 0.0
    %2101 = vmatpush1.msra.mxu0 0.0
    %2102 = vmatprep.subr.mxu0 0.0
    %2103 = vmatpush1.msra.mxu0 0.0
    %2104 = vmatprep.subr.mxu0 0.0
    %2105 = vmatpush1.msra.mxu0 0.0
    %2106 = vmatprep.subr.mxu0 0.0
    %2107 = vmatpush1.msra.mxu0 0.0
    %2108 = vmatprep.subr.mxu0 0.0
    %2109 = vmatpush1.msra.mxu0 0.0
    %2110 = vmatprep.subr.mxu0 0.0
    %2111 = vmatpush1.msra.mxu0 0.0
    %2112 = vmatprep.subr.mxu0 0.0
    %2113 = vmatpush1.msra.mxu0 0.0
    %2114 = vmatprep.subr.mxu0 0.0
    %2115 = vmatpush1.msra.mxu0 0.0
    %2116 = vmatprep.subr.mxu0 0.0
    %2117 = vmatpush1.msra.mxu0 0.0
    %2118 = vmatprep.subr.mxu0 0.0
    %2119 = vmatpush1.msra.mxu0 0.0
    %2120 = vmatprep.subr.mxu0 0.0
    %2121 = vmatpush1.msra.mxu0 0.0
    %2122 = vmatprep.subr.mxu0 0.0
    %2123 = vmatpush1.msra.mxu0 0.0
    %2124 = vmatprep.subr.mxu0 0.0
    %2125 = vmatpush1.msra.mxu0 0.0
    %2126 = vmatprep.subr.mxu0 0.0
    %2127 = vmatpush1.msra.mxu0 0.0
    %2128 = vmatprep.subr.mxu0 0.0
    %2129 = vmatpush1.msra.mxu0 0.0
    %2130 = vmatprep.subr.mxu0 0.0
    %2131 = vmatpush1.msra.mxu0 0.0
    %2132 = vmatprep.subr.mxu0 0.0
    %2133 = vmatpush1.msra.mxu0 0.0
    %2134 = vmatprep.subr.mxu0 0.0
    %2135 = vmatpush1.msra.mxu0 0.0
    %2136 = vmatprep.subr.mxu0 0.0
    %2137 = vmatpush1.msra.mxu0 0.0
    %2138 = vmatprep.subr.mxu0 0.0
    %2139 = vmatpush1.msra.mxu0 0.0
    %2140 = vmatprep.subr.mxu0 0.0
    %2141 = vmatpush1.msra.mxu0 0.0
    %2142 = vmatprep.subr.mxu0 0.0
    %2143 = vmatpush1.msra.mxu0 0.0
    %2144 = vmatprep.subr.mxu0 0.0
    %2145 = vmatpush1.msra.mxu0 0.0
    %2146 = vmatprep.subr.mxu0 0.0
    %2147 = vmatpush1.msra.mxu0 0.0
    %2148 = vmatprep.subr.mxu0 0.0
    %2149 = vmatpush1.msra.mxu0 0.0
    %2150 = vmatprep.subr.mxu0 0.0
    %2151 = vmatpush1.msra.mxu0 0.0
    %2152 = vmatprep.subr.mxu0 0.0
    %2153 = vmatpush1.msra.mxu0 0.0
    %2154 = vmatprep.subr.mxu0 0.0
    %2155 = vmatpush1.msra.mxu0 0.0
    %2156 = vmatprep.subr.mxu0 0.0
    %2157 = vmatpush1.msra.mxu0 0.0
    %2158 = vmatprep.subr.mxu0 0.0
    %2159 = vmatpush1.msra.mxu0 0.0
    %2160 = vmatprep.subr.mxu0 0.0
    %2161 = vmatpush1.msra.mxu0 0.0
    %2162 = vmatprep.mubr.f32.mxu0 0.0
    %2163 = vmatmul.mubr.f32.gmra.mrb[0].mxu0 %v2096
    %v2164 = vpop.f32.mrb[0].mxu0
    %v2165 = vadd.f32 0.0, %v2164
    %v2166 = vpop.f32.mrb[0].mxu0
    %2167 = vdwg.mxu0
    %2169 = vset.pattern.permute.xlu0 0
    %2170 = vperm.xlu0 %2169, %v2086
    %v2171 = vpop.permute.xlu0 %2170
    %v2172 = vlaneseq
    %v2173 = vshrl.u32 %v2172, 7
    %v2174 = vsub.s32 %v130, %v2173
    %v2175 = vrot.slane %v2171, %v2174
    %v2176 = vsel %vm2095, %v2175, 0
    %2178 = vmatprep.subr.mxu0 0.0
    %2179 = vmatpush1.msra.mxu0 %v1776
    %2180 = vmatprep.subr.mxu0 0.0
    %2181 = vmatpush1.msra.mxu0 0.0
    %2182 = vmatprep.subr.mxu0 0.0
    %2183 = vmatpush1.msra.mxu0 0.0
    %2184 = vmatprep.subr.mxu0 0.0
    %2185 = vmatpush1.msra.mxu0 0.0
    %2186 = vmatprep.subr.mxu0 0.0
    %2187 = vmatpush1.msra.mxu0 0.0
    %2188 = vmatprep.subr.mxu0 0.0
    %2189 = vmatpush1.msra.mxu0 0.0
    %2190 = vmatprep.subr.mxu0 0.0
    %2191 = vmatpush1.msra.mxu0 0.0
    %2192 = vmatprep.subr.mxu0 0.0
    %2193 = vmatpush1.msra.mxu0 0.0
    %2194 = vmatprep.subr.mxu0 0.0
    %2195 = vmatpush1.msra.mxu0 0.0
    %2196 = vmatprep.subr.mxu0 0.0
    %2197 = vmatpush1.msra.mxu0 0.0
    %2198 = vmatprep.subr.mxu0 0.0
    %2199 = vmatpush1.msra.mxu0 0.0
    %2200 = vmatprep.subr.mxu0 0.0
    %2201 = vmatpush1.msra.mxu0 0.0
    %2202 = vmatprep.subr.mxu0 0.0
    %2203 = vmatpush1.msra.mxu0 0.0
    %2204 = vmatprep.subr.mxu0 0.0
    %2205 = vmatpush1.msra.mxu0 0.0
    %2206 = vmatprep.subr.mxu0 0.0
    %2207 = vmatpush1.msra.mxu0 0.0
    %2208 = vmatprep.subr.mxu0 0.0
    %2209 = vmatpush1.msra.mxu0 0.0
    %2210 = vmatprep.subr.mxu0 0.0
    %2211 = vmatpush1.msra.mxu0 0.0
    %2212 = vmatprep.subr.mxu0 0.0
    %2213 = vmatpush1.msra.mxu0 0.0
    %2214 = vmatprep.subr.mxu0 0.0
    %2215 = vmatpush1.msra.mxu0 0.0
    %2216 = vmatprep.subr.mxu0 0.0
    %2217 = vmatpush1.msra.mxu0 0.0
    %2218 = vmatprep.subr.mxu0 0.0
    %2219 = vmatpush1.msra.mxu0 0.0
    %2220 = vmatprep.subr.mxu0 0.0
    %2221 = vmatpush1.msra.mxu0 0.0
    %2222 = vmatprep.subr.mxu0 0.0
    %2223 = vmatpush1.msra.mxu0 0.0
    %2224 = vmatprep.subr.mxu0 0.0
    %2225 = vmatpush1.msra.mxu0 0.0
    %2226 = vmatprep.subr.mxu0 0.0
    %2227 = vmatpush1.msra.mxu0 0.0
    %2228 = vmatprep.subr.mxu0 0.0
    %2229 = vmatpush1.msra.mxu0 0.0
    %2230 = vmatprep.subr.mxu0 0.0
    %2231 = vmatpush1.msra.mxu0 0.0
    %2232 = vmatprep.subr.mxu0 0.0
    %2233 = vmatpush1.msra.mxu0 0.0
    %2234 = vmatprep.subr.mxu0 0.0
    %2235 = vmatpush1.msra.mxu0 0.0
    %2236 = vmatprep.subr.mxu0 0.0
    %2237 = vmatpush1.msra.mxu0 0.0
    %2238 = vmatprep.subr.mxu0 0.0
    %2239 = vmatpush1.msra.mxu0 0.0
    %2240 = vmatprep.subr.mxu0 0.0
    %2241 = vmatpush1.msra.mxu0 0.0
    %2242 = vmatprep.mubr.f32.mxu0 0.0
    %2243 = vmatmul.mubr.f32.gmra.mrb[0].mxu0 %v2176
    %v2244 = vpop.f32.mrb[0].mxu0
    %v2245 = vadd.f32 0.0, %v2244
    %v2246 = vpop.f32.mrb[0].mxu0
    %2247 = vdwg.mxu0
    %v2248 = vld [vmem:[#allocation10] sm:$0xff]
    %v2249 = vld [vmem:[#allocation10 + $0x8] sm:$0xff]
    %v2250 = vld [vmem:[#allocation10 + $0x10] sm:$0xff]
    %v2251 = vld [vmem:[#allocation10 + $0x18] sm:$0xff]
    %v2252 = vld [vmem:[#allocation10 + $0x20] sm:$0xff]
    %v2253 = vld [vmem:[#allocation10 + $0x28] sm:$0xff]
    %v2254 = vld [vmem:[#allocation10 + $0x30] sm:$0xff]
    %v2255 = vld [vmem:[#allocation10 + $0x38] sm:$0xff]
    %v2256 = vld [vmem:[#allocation10 + $0x40] sm:$0xff]
    %v2257 = vld [vmem:[#allocation10 + $0x48] sm:$0xff]
    %v2258 = vld [vmem:[#allocation10 + $0x50] sm:$0xff]
    %v2259 = vld [vmem:[#allocation10 + $0x58] sm:$0xff]
    %v2260 = vld [vmem:[#allocation10 + $0x60] sm:$0xff]
    %v2261 = vld [vmem:[#allocation10 + $0x68] sm:$0xff]
    %v2262 = vld [vmem:[#allocation10 + $0x70] sm:$0xff]
    %v2263 = vld [vmem:[#allocation10 + $0x78] sm:$0xff]
    %v2264 = vld [vmem:[%s10] sm:$0x1]
    %v2266 = vlaneseq
    %v2267 = vshrl.u32 %v2266, 7
    %v2268 = vsub.s32 0, %v2267
    %v2269 = vrot.slane %v2264, %v2268
    %2271 = vmatprep.subr.mxu0 0.0
    %2272 = vmatpush1.msra.mxu0 %v2248
    %2273 = vmatprep.subr.mxu0 0.0
    %2274 = vmatpush1.msra.mxu0 %v2249
    %2275 = vmatprep.subr.mxu0 0.0
    %2276 = vmatpush1.msra.mxu0 %v2250
    %2277 = vmatprep.subr.mxu0 0.0
    %2278 = vmatpush1.msra.mxu0 %v2251
    %2279 = vmatprep.subr.mxu0 0.0
    %2280 = vmatpush1.msra.mxu0 %v2252
    %2281 = vmatprep.subr.mxu0 0.0
    %2282 = vmatpush1.msra.mxu0 %v2253
    %2283 = vmatprep.subr.mxu0 0.0
    %2284 = vmatpush1.msra.mxu0 %v2254
    %2285 = vmatprep.subr.mxu0 0.0
    %2286 = vmatpush1.msra.mxu0 %v2255
    %2287 = vmatprep.subr.mxu0 0.0
    %2288 = vmatpush1.msra.mxu0 %v2256
    %2289 = vmatprep.subr.mxu0 0.0
    %2290 = vmatpush1.msra.mxu0 %v2257
    %2291 = vmatprep.subr.mxu0 0.0
    %2292 = vmatpush1.msra.mxu0 %v2258
    %2293 = vmatprep.subr.mxu0 0.0
    %2294 = vmatpush1.msra.mxu0 %v2259
    %2295 = vmatprep.subr.mxu0 0.0
    %2296 = vmatpush1.msra.mxu0 %v2260
    %2297 = vmatprep.subr.mxu0 0.0
    %2298 = vmatpush1.msra.mxu0 %v2261
    %2299 = vmatprep.subr.mxu0 0.0
    %2300 = vmatpush1.msra.mxu0 %v2262
    %2301 = vmatprep.subr.mxu0 0.0
    %2302 = vmatpush1.msra.mxu0 %v2263
    %2303 = vmatprep.subr.mxu0 0.0
    %2304 = vmatpush1.msra.mxu0 0.0
    %2305 = vmatprep.subr.mxu0 0.0
    %2306 = vmatpush1.msra.mxu0 0.0
    %2307 = vmatprep.subr.mxu0 0.0
    %2308 = vmatpush1.msra.mxu0 0.0
    %2309 = vmatprep.subr.mxu0 0.0
    %2310 = vmatpush1.msra.mxu0 0.0
    %2311 = vmatprep.subr.mxu0 0.0
    %2312 = vmatpush1.msra.mxu0 0.0
    %2313 = vmatprep.subr.mxu0 0.0
    %2314 = vmatpush1.msra.mxu0 0.0
    %2315 = vmatprep.subr.mxu0 0.0
    %2316 = vmatpush1.msra.mxu0 0.0
    %2317 = vmatprep.subr.mxu0 0.0
    %2318 = vmatpush1.msra.mxu0 0.0
    %2319 = vmatprep.subr.mxu0 0.0
    %2320 = vmatpush1.msra.mxu0 0.0
    %2321 = vmatprep.subr.mxu0 0.0
    %2322 = vmatpush1.msra.mxu0 0.0
    %2323 = vmatprep.subr.mxu0 0.0
    %2324 = vmatpush1.msra.mxu0 0.0
    %2325 = vmatprep.subr.mxu0 0.0
    %2326 = vmatpush1.msra.mxu0 0.0
    %2327 = vmatprep.subr.mxu0 0.0
    %2328 = vmatpush1.msra.mxu0 0.0
    %2329 = vmatprep.subr.mxu0 0.0
    %2330 = vmatpush1.msra.mxu0 0.0
    %2331 = vmatprep.subr.mxu0 0.0
    %2332 = vmatpush1.msra.mxu0 0.0
    %2333 = vmatprep.subr.mxu0 0.0
    %2334 = vmatpush1.msra.mxu0 0.0
    %2335 = vmatprep.mubr.f32.mxu0 0.0
    %2336 = vmatmul.mubr.f32.gmra.mrb[0].mxu0 %v1884
    %v2337 = vpop.f32.mrb[0].mxu0
    %v2338 = vadd.f32 %v2269, %v2337
    %v2339 = vpop.f32.mrb[0].mxu0
    %2340 = vdwg.mxu0
    %v2341 = vmax.f32 %v2338, 0.0
    %v2342 = vld [vmem:[#allocation11] sm:$0xff]
    %v2343 = vld [vmem:[#allocation11 + $0x8] sm:$0xff]
    %v2344 = vld [vmem:[#allocation11 + $0x10] sm:$0xff]
    %v2345 = vld [vmem:[#allocation11 + $0x18] sm:$0xff]
    %v2346 = vld [vmem:[#allocation11 + $0x20] sm:$0xff]
    %v2347 = vld [vmem:[#allocation11 + $0x28] sm:$0xff]
    %v2348 = vld [vmem:[#allocation11 + $0x30] sm:$0xff]
    %v2349 = vld [vmem:[#allocation11 + $0x38] sm:$0xff]
    %v2350 = vld [vmem:[%s12] sm:$0x1]
    %v2352 = vlaneseq
    %v2353 = vshrl.u32 %v2352, 7
    %v2354 = vsub.s32 0, %v2353
    %v2355 = vrot.slane %v2350, %v2354
    %v2359 = vrot.slane %v2245, 7
    %v2360 = vsel %vm2025, %v2359, %v2165
    %v2361 = vsel %vm1785, %v2360, 0
    %2363 = vmatprep.subr.mxu0 0.0
    %2364 = vmatpush1.msra.mxu0 %v2342
    %2365 = vmatprep.subr.mxu0 0.0
    %2366 = vmatpush1.msra.mxu0 %v2343
    %2367 = vmatprep.subr.mxu0 0.0
    %2368 = vmatpush1.msra.mxu0 %v2344
    %2369 = vmatprep.subr.mxu0 0.0
    %2370 = vmatpush1.msra.mxu0 %v2345
    %2371 = vmatprep.subr.mxu0 0.0
    %2372 = vmatpush1.msra.mxu0 %v2346
    %2373 = vmatprep.subr.mxu0 0.0
    %2374 = vmatpush1.msra.mxu0 %v2347
    %2375 = vmatprep.subr.mxu0 0.0
    %2376 = vmatpush1.msra.mxu0 %v2348
    %2377 = vmatprep.subr.mxu0 0.0
    %2378 = vmatpush1.msra.mxu0 %v2349
    %2379 = vmatprep.subr.mxu0 0.0
    %2380 = vmatpush1.msra.mxu0 0.0
    %2381 = vmatprep.subr.mxu0 0.0
    %2382 = vmatpush1.msra.mxu0 0.0
    %2383 = vmatprep.subr.mxu0 0.0
    %2384 = vmatpush1.msra.mxu0 0.0
    %2385 = vmatprep.subr.mxu0 0.0
    %2386 = vmatpush1.msra.mxu0 0.0
    %2387 = vmatprep.subr.mxu0 0.0
    %2388 = vmatpush1.msra.mxu0 0.0
    %2389 = vmatprep.subr.mxu0 0.0
    %2390 = vmatpush1.msra.mxu0 0.0
    %2391 = vmatprep.subr.mxu0 0.0
    %2392 = vmatpush1.msra.mxu0 0.0
    %2393 = vmatprep.subr.mxu0 0.0
    %2394 = vmatpush1.msra.mxu0 0.0
    %2395 = vmatprep.subr.mxu0 0.0
    %2396 = vmatpush1.msra.mxu0 0.0
    %2397 = vmatprep.subr.mxu0 0.0
    %2398 = vmatpush1.msra.mxu0 0.0
    %2399 = vmatprep.subr.mxu0 0.0
    %2400 = vmatpush1.msra.mxu0 0.0
    %2401 = vmatprep.subr.mxu0 0.0
    %2402 = vmatpush1.msra.mxu0 0.0
    %2403 = vmatprep.subr.mxu0 0.0
    %2404 = vmatpush1.msra.mxu0 0.0
    %2405 = vmatprep.subr.mxu0 0.0
    %2406 = vmatpush1.msra.mxu0 0.0
    %2407 = vmatprep.subr.mxu0 0.0
    %2408 = vmatpush1.msra.mxu0 0.0
    %2409 = vmatprep.subr.mxu0 0.0
    %2410 = vmatpush1.msra.mxu0 0.0
    %2411 = vmatprep.subr.mxu0 0.0
    %2412 = vmatpush1.msra.mxu0 0.0
    %2413 = vmatprep.subr.mxu0 0.0
    %2414 = vmatpush1.msra.mxu0 0.0
    %2415 = vmatprep.subr.mxu0 0.0
    %2416 = vmatpush1.msra.mxu0 0.0
    %2417 = vmatprep.subr.mxu0 0.0
    %2418 = vmatpush1.msra.mxu0 0.0
    %2419 = vmatprep.subr.mxu0 0.0
    %2420 = vmatpush1.msra.mxu0 0.0
    %2421 = vmatprep.subr.mxu0 0.0
    %2422 = vmatpush1.msra.mxu0 0.0
    %2423 = vmatprep.subr.mxu0 0.0
    %2424 = vmatpush1.msra.mxu0 0.0
    %2425 = vmatprep.subr.mxu0 0.0
    %2426 = vmatpush1.msra.mxu0 0.0
    %2427 = vmatprep.mubr.f32.mxu0 0.0
    %2428 = vmatmul.mubr.f32.gmra.mrb[0].mxu0 %v2361
    %v2429 = vpop.f32.mrb[0].mxu0
    %v2430 = vadd.f32 %v2355, %v2429
    %v2431 = vpop.f32.mrb[0].mxu0
    %2432 = vdwg.mxu0
    %v2433 = vmax.f32 %v2430, 0.0
    %v2434 = vmul.f32 %v2341, %v2433
    %2435 = vst [vmem:[#allocation13] sm:$0x3] %v2434
    // Predicated region
    $region78: #{tpu_custom_call.1} parent=1 // pred_check
      _
    $region79: #{tpu_custom_call.1} parent=1 // pred_check_branch
      %2437 = sbr.rel (0) target = $region81
    $region80: #{tpu_custom_call.1} parent=1 // pred_region
      %s2439 = ssub.s32 32, 32
      %2440 = vsyncadd [#allocation4], %s2439
      %s2442 = sshll.u32 [#allocation13], 4
      %s2443 = int_to_ptr.vmem [resolvable:$true] %s2442
      %2445 = dma.vmem_to_hbm [thread:$0]  %s2443, 32, %s13, [#allocation4]
    $region81: #{tpu_custom_call.1} parent=1 // pred_fallthru
      _
    // Predicated region
    $region82: #{tpu_custom_call.1} parent=1 // pred_check
      _
    $region83: #{tpu_custom_call.1} parent=1 // pred_check_branch
      %2447 = sbr.rel (0) target = $region85
    $region84: #{tpu_custom_call.1} parent=1 // pred_region
      %2448 = dma.done [#allocation4], 32
    $region85: #{tpu_custom_call.1} parent=1 // pred_fallthru
      _
    %2449 = vsyncpa [#allocation3], 1
    %2450 = vsyncpa [#allocation6], 1
    %2451 = vsyncpa [#allocation9], 1
    %2452 = vsyncpa [#allocation12], 1
    %2453 = vsyncpa [#allocation4], 1

</llo_original>
